<compile_context>
chip_gen: v7x
topology: tpu7x:2x2x1
jax: 0.10.0
libtpu: 0.0.40
codegen_flags: <defaults>
</compile_context>

<pallas_src>
import jax
import jax.numpy as jnp
from jax import lax
from jax.experimental import pallas as pl
from jax.experimental.pallas import tpu as pltpu


def attflat_kernel(x_ref, bias_ref, w1_ref, b1_ref, w2_ref, b2_ref,
                   wm_ref, bm_ref, out_ref):
    TB, S, H = x_ref.shape
    G = w2_ref.shape[1]

    x3 = x_ref[...]                              # (TB, S, H) bf16
    x2 = x3.reshape(TB * S, H)                   # free view: S % 8 == 0

    # MLP: FC(H -> MID) + ReLU (+ dropout == identity), Linear(MID -> G).
    # bf16 MXU operands, f32 accumulation.
    h = jnp.dot(x2, w1_ref[...], preferred_element_type=jnp.float32) + b1_ref[...]
    h = jnp.maximum(h, 0.0).astype(jnp.bfloat16)
    logits = jnp.dot(h, w2_ref[...], preferred_element_type=jnp.float32) + b2_ref[...]

    # Lane-dense softmax: put S on the 128-lane axis.  The (TB,S,G)->(TB,G,S)
    # transpose only moves G<=2 lanes worth of data per row (tiny relayout),
    # and pays back with ~S/G fewer VPU/EUP pushes in the softmax.
    logits = jnp.transpose(logits.reshape(TB, S, G), (0, 2, 1))   # (TB, G, S)
    logits = logits + bias_ref[...][:, None, :]                   # additive -1e9 mask

    m = jnp.max(logits, axis=-1, keepdims=True)                   # (TB, G, 1)
    e = jnp.exp(logits - m)
    denom = jnp.sum(e, axis=-1, keepdims=True)
    att = e * pl.reciprocal(denom, approx=True)                   # (TB, G, S) f32

    # Glimpse pooling: atted[b, g, :] = sum_s att[b, g, s] * x[b, s, :].
    # With att in (TB, G, S), both operands are already MXU-ready (K = S on
    # lhs lanes / rhs sublanes) -- no materialized transpose.
    atted = lax.dot_general(
        att.astype(jnp.bfloat16), x3,
        dimension_numbers=(((2,), (1,)), ((0,), (0,))),
        preferred_element_type=jnp.float32)                        # (TB, G, H) f32

    # linear_merge on the glimpse-major weight (G, H, OUT): the PyTorch
    # (G*H)-concat never materializes in-kernel; wm_ref[g] is a cheap
    # leading-axis index and the final store is a lane-dense (TB, OUT) block.
    acc = jnp.dot(atted[:, 0, :].astype(jnp.bfloat16), wm_ref[0],
                  preferred_element_type=jnp.float32)
    for g in range(1, G):
        acc = acc + jnp.dot(atted[:, g, :].astype(jnp.bfloat16), wm_ref[g],
                            preferred_element_type=jnp.float32)
    out_ref[...] = acc + bm_ref[...]


def _vmem_capacity_bytes():
    """Per-core VMEM capacity; conservative (v7x) fallback if unavailable."""
    try:
        info = pltpu.get_tpu_info()
        cap = getattr(info, "vmem_capacity_bytes", None)
        if cap:
            return int(cap)
    except Exception:
        pass
    return 64 * 1024 * 1024


def _pick_tb(B, s_pad, h, mid, out_pad, vmem_bytes, *, min_steps=2):
    """VMEM-aware batch-block size.

    The budget accounts for the double-buffered x/bias/output pipeline blocks
    plus the f32 MLP hidden state.  Prefers multiples of 8 (sublane-aligned
    output block) and keeps >= min_steps grid steps when the batch is large
    enough so the 'parallel' batch axis can be split across v7x's two TCs.
    """
    per_b = (2 * s_pad * h * 2          # x block (bf16), double-buffered
             + 2 * s_pad * 4            # mask-bias block (f32), double-buffered
             + s_pad * mid * 6          # MLP hidden (f32 value + bf16 cast)
             + 8 * s_pad * 4            # logits/att working set (G<=2 padded to 8 sublanes)
             + 2 * out_pad * 4)         # output block (f32), double-buffered
    budget = int(vmem_bytes * 0.5)      # headroom: weights, spills, compiler scratch
    divs = [tb for tb in range(1, B + 1) if B % tb == 0]
    fits = [tb for tb in divs if tb * per_b <= budget] or [divs[0]]
    if B >= 16:                          # keep >= min_steps steps for megacore
        multi = [tb for tb in fits if B // tb >= min_steps]
        if multi:
            fits = multi
    aligned = [tb for tb in fits if tb % 8 == 0]
    return max(aligned) if aligned else max(fits)


def attflat(x, x_mask, params):
    """x: [B, S, H] f32; x_mask: [B, 1, 1, S] bool. Returns [B, FLAT_OUT_SIZE] f32."""
    B, S, H = x.shape
    w1, b1 = params["w1"], params["b1"]
    w2, b2 = params["w2"], params["b2"]
    wm, bm = params["wm"], params["bm"]
    MID, G, OUT = w1.shape[1], w2.shape[1], wm.shape[1]

    # ---- wrapper-side layout prep (one pass, outside the kernel) ------------
    S_pad = -(-S // 8) * 8               # keep in-kernel reshapes free views
    OUT_pad = -(-OUT // 128) * 128       # lane-dense output block / stores

    x_p = x if S_pad == S else jnp.pad(x, ((0, 0), (0, S_pad - S), (0, 0)))
    x_p = x_p.astype(jnp.bfloat16)       # bf16 MXU operand; halves x HBM bytes

    # Additive mask bias, lane-dense (B, S_pad): -1e9 on masked OR padded
    # positions, 0 elsewhere (padded x rows are zero, so pooling stays exact).
    mask2 = x_mask.reshape(B, S)
    if S_pad != S:
        mask2 = jnp.pad(mask2, ((0, 0), (0, S_pad - S)), constant_values=True)
    bias = jnp.where(mask2, jnp.float32(-1e9), jnp.float32(0.0))

    # Weights as bf16 MXU operands; biases stay f32 (added to f32 accumulators).
    w1b = w1.astype(jnp.bfloat16)
    w2b = w2.astype(jnp.bfloat16)
    wm3 = wm.reshape(G, H, OUT)          # glimpse-major merge weight
    bm_p = bm
    if OUT_pad != OUT:
        wm3 = jnp.pad(wm3, ((0, 0), (0, 0), (0, OUT_pad - OUT)))
        bm_p = jnp.pad(bm, ((0, 0), (0, OUT_pad - OUT)))
    wm3 = wm3.astype(jnp.bfloat16)
    b1_f, b2_f, bm_f = (b1.astype(jnp.float32), b2.astype(jnp.float32),
                        bm_p.astype(jnp.float32))

    # ---- per-generation block sizing ----------------------------------------
    vmem_cap = _vmem_capacity_bytes()
    TB = _pick_tb(B, S_pad, H, MID, OUT_pad, vmem_cap)
    assert B % TB == 0, (B, TB)
    grid = (B // TB,)
    vmem_limit = min(vmem_cap - (8 << 20), int(vmem_cap * 0.8), 112 << 20)

    def run(single_buffer_weights):
        wkw = {}
        if single_buffer_weights:
            # Constant-index blocks: the second pipeline buffer is pure waste.
            wkw["pipeline_mode"] = pl.Buffered(1)

        def const_spec(*shape):
            return pl.BlockSpec(shape, lambda i: (0,) * len(shape), **wkw)

        in_specs = [
            pl.BlockSpec((TB, S_pad, H), lambda i: (i, 0, 0)),   # x (bf16)
            pl.BlockSpec((TB, S_pad), lambda i: (i, 0)),         # mask bias (f32)
            const_spec(H, MID),          # w1
            const_spec(1, MID),          # b1
            const_spec(MID, G),          # w2
            const_spec(1, G),            # b2
            const_spec(G, H, OUT_pad),   # wm (glimpse-major)
            const_spec(1, OUT_pad),      # bm
        ]
        out_specs = pl.BlockSpec((TB, OUT_pad), lambda i: (i, 0))

        return pl.pallas_call(
            attflat_kernel,
            out_shape=jax.ShapeDtypeStruct((B, OUT_pad), jnp.float32),
            grid_spec=pltpu.PrefetchScalarGridSpec(
                num_scalar_prefetch=0,
                grid=grid,
                in_specs=in_specs,
                out_specs=out_specs,
            ),
            compiler_params=pltpu.CompilerParams(
                dimension_semantics=("parallel",),   # batch axis -> both TCs on v7x
                vmem_limit_bytes=vmem_limit,
            ),
        )(x_p, bias, w1b, b1_f, w2b, b2_f, wm3, bm_f)

    try:
        out = run(True)        # single-buffered constant weight blocks
    except Exception:          # pipeline_mode unsupported on this jax/backend
        out = run(False)

    return out[:, :OUT]


def attflat_ref(x, x_mask, params):
    """Pure-JAX f32 (HIGHEST precision) reference mirroring the PyTorch forward."""
    B, S, H = x.shape
    w1, b1, w2, b2, wm, bm = (params["w1"], params["b1"], params["w2"],
                              params["b2"], params["wm"], params["bm"])
    G = w2.shape[1]
    hp = lax.Precision.HIGHEST
    att = jnp.dot(jnp.maximum(jnp.dot(x, w1, precision=hp) + b1, 0.0), w2,
                  precision=hp) + b2                              # (B, S, G)
    att = jnp.where(x_mask.reshape(B, S, 1), -1e9, att)
    att = jax.nn.softmax(att, axis=1)
    att_list = [jnp.sum(att[:, :, i:i + 1] * x, axis=1) for i in range(G)]
    x_atted = jnp.concatenate(att_list, axis=1)                   # (B, G*H)
    return jnp.dot(x_atted, wm, precision=hp) + bm


if __name__ == "__main__":
    # Small config consistent with the module's __init__ (inference; dropout
    # inside the MLP is identity).
    B, S = 2, 8
    HIDDEN_SIZE = 32
    FLAT_MLP_SIZE = 64
    FLAT_GLIMPSES = 2
    FLAT_OUT_SIZE = 64

    key = jax.random.PRNGKey(0)
    ks = jax.random.split(key, 8)

    params = {
        "w1": jax.random.normal(ks[0], (HIDDEN_SIZE, FLAT_MLP_SIZE), jnp.float32) * 0.1,
        "b1": jax.random.normal(ks[1], (1, FLAT_MLP_SIZE), jnp.float32) * 0.01,
        "w2": jax.random.normal(ks[2], (FLAT_MLP_SIZE, FLAT_GLIMPSES), jnp.float32) * 0.1,
        "b2": jax.random.normal(ks[3], (1, FLAT_GLIMPSES), jnp.float32) * 0.01,
        "wm": jax.random.normal(ks[4], (HIDDEN_SIZE * FLAT_GLIMPSES, FLAT_OUT_SIZE),
                                jnp.float32) * 0.1,
        "bm": jax.random.normal(ks[5], (1, FLAT_OUT_SIZE), jnp.float32) * 0.01,
    }

    x = jax.random.normal(ks[6], (B, S, HIDDEN_SIZE), jnp.float32)
    # mask: pad out the last 2 positions of batch 1 (bool, True = masked)
    seq_ids = jnp.arange(S)[None, :]
    valid_lens = jnp.array([S, S - 2])[:, None]
    x_mask = (seq_ids >= valid_lens).reshape(B, 1, 1, S)

    out = attflat(x, x_mask, params)
    out = jax.block_until_ready(out)

    ref = attflat_ref(x, x_mask, params)
    assert out.shape == (B, FLAT_OUT_SIZE), out.shape
    # bf16 MXU operands (f32 accumulation) + EUP approximate reciprocal in the
    # softmax normalization => bf16-parity tolerance vs the HIGHEST-precision
    # f32 reference (observed max-abs error is ~5e-3 at these shapes).
    err = float(jnp.max(jnp.abs(out - ref)))
    assert jnp.allclose(out, ref, atol=4e-2, rtol=4e-2), f"max abs err {err}"
    print("KERNEL_OK")
</pallas_src>

<mosaic_0001>
module attributes {stable_mosaic.version = 11 : i64} {
  func.func @attflat_kernel(%arg0: i32, %arg1: memref<2x8x32xbf16, #tpu.memory_space<vmem>>, %arg2: memref<2x8xf32, #tpu.memory_space<vmem>>, %arg3: memref<32x64xbf16, #tpu.memory_space<vmem>>, %arg4: memref<1x64xf32, #tpu.memory_space<vmem>>, %arg5: memref<64x2xbf16, #tpu.memory_space<vmem>>, %arg6: memref<1x2xf32, #tpu.memory_space<vmem>>, %arg7: memref<2x32x128xbf16, #tpu.memory_space<vmem>>, %arg8: memref<1x128xf32, #tpu.memory_space<vmem>>, %arg9: memref<2x128xf32, #tpu.memory_space<vmem>>) attributes {dimension_semantics = [#tpu.dimension_semantics<parallel>], iteration_bounds = array<i64: 1>, scalar_prefetch = 0 : i64, scratch_operands = 0 : i64, tpu.core_type = #tpu.core_type<tc>, window_params = [{transform_indices = @transform_0, window_bounds = array<i64: 2, 8, 32>}, {transform_indices = @transform_1, window_bounds = array<i64: 2, 8>}, {pipeline_mode = #tpu.pipeline_mode<synchronous>, transform_indices = @transform_2, window_bounds = array<i64: 32, 64>}, {pipeline_mode = #tpu.pipeline_mode<synchronous>, transform_indices = @transform_3, window_bounds = array<i64: 1, 64>}, {pipeline_mode = #tpu.pipeline_mode<synchronous>, transform_indices = @transform_4, window_bounds = array<i64: 64, 2>}, {pipeline_mode = #tpu.pipeline_mode<synchronous>, transform_indices = @transform_5, window_bounds = array<i64: 1, 2>}, {pipeline_mode = #tpu.pipeline_mode<synchronous>, transform_indices = @transform_6, window_bounds = array<i64: 2, 32, 128>}, {pipeline_mode = #tpu.pipeline_mode<synchronous>, transform_indices = @transform_7, window_bounds = array<i64: 1, 128>}, {transform_indices = @transform_8, window_bounds = array<i64: 2, 128>}]} {
    %c0 = arith.constant 0 : index
    %c0_0 = arith.constant 0 : index
    %c0_1 = arith.constant 0 : index
    %0 = vector.load %arg1[%c0, %c0_0, %c0_1] : memref<2x8x32xbf16, #tpu.memory_space<vmem>>, vector<2x8x32xbf16>
    %1 = vector.shape_cast %0 : vector<2x8x32xbf16> to vector<16x32xbf16>
    %c0_2 = arith.constant 0 : index
    %c0_3 = arith.constant 0 : index
    %2 = vector.load %arg3[%c0_2, %c0_3] : memref<32x64xbf16, #tpu.memory_space<vmem>>, vector<32x64xbf16>
    %cst = arith.constant dense<0.000000e+00> : vector<16x64xf32>
    %3 = tpu.matmul %1, %2, %cst {dimension_numbers = #tpu.dot_dimension_numbers<[1], [0], [0], [1], [0, 0, 1, 1], [], []>} : vector<16x32xbf16>, vector<32x64xbf16>, vector<16x64xf32> -> vector<16x64xf32>
    %c0_4 = arith.constant 0 : index
    %c0_5 = arith.constant 0 : index
    %4 = vector.load %arg4[%c0_4, %c0_5] : memref<1x64xf32, #tpu.memory_space<vmem>>, vector<1x64xf32>
    %5 = vector.broadcast %4 : vector<1x64xf32> to vector<16x64xf32>
    %6 = arith.addf %3, %5 : vector<16x64xf32>
    %cst_6 = arith.constant 0.000000e+00 : f32
    %7 = vector.broadcast %cst_6 : f32 to vector<16x64xf32>
    %8 = arith.maximumf %6, %7 : vector<16x64xf32>
    %9 = arith.truncf %8 : vector<16x64xf32> to vector<16x64xbf16>
    %c0_7 = arith.constant 0 : index
    %c0_8 = arith.constant 0 : index
    %10 = vector.load %arg5[%c0_7, %c0_8] : memref<64x2xbf16, #tpu.memory_space<vmem>>, vector<64x2xbf16>
    %cst_9 = arith.constant dense<0.000000e+00> : vector<16x2xf32>
    %11 = tpu.matmul %9, %10, %cst_9 {dimension_numbers = #tpu.dot_dimension_numbers<[1], [0], [0], [1], [0, 0, 1, 1], [], []>} : vector<16x64xbf16>, vector<64x2xbf16>, vector<16x2xf32> -> vector<16x2xf32>
    %c0_10 = arith.constant 0 : index
    %c0_11 = arith.constant 0 : index
    %12 = vector.load %arg6[%c0_10, %c0_11] : memref<1x2xf32, #tpu.memory_space<vmem>>, vector<1x2xf32>
    %13 = vector.broadcast %12 : vector<1x2xf32> to vector<16x2xf32>
    %14 = arith.addf %11, %13 : vector<16x2xf32>
    %15 = vector.shape_cast %14 : vector<16x2xf32> to vector<2x8x2xf32>
    %16 = tpu.transpose %15, [0, 2, 1] : vector<2x8x2xf32> -> vector<2x2x8xf32>
    %c0_12 = arith.constant 0 : index
    %c0_13 = arith.constant 0 : index
    %17 = vector.load %arg2[%c0_12, %c0_13] : memref<2x8xf32, #tpu.memory_space<vmem>>, vector<2x8xf32>
    %18 = vector.shape_cast %17 : vector<2x8xf32> to vector<2x1x8xf32>
    %19 = vector.broadcast %18 : vector<2x1x8xf32> to vector<2x2x8xf32>
    %20 = arith.addf %16, %19 : vector<2x2x8xf32>
    %cst_14 = arith.constant dense<0xFF800000> : vector<2x2xf32>
    %21 = vector.multi_reduction <maximumf>, %20, %cst_14 [2] : vector<2x2x8xf32> to vector<2x2xf32>
    %22 = vector.shape_cast %21 : vector<2x2xf32> to vector<2x2x1xf32>
    %23 = vector.broadcast %22 : vector<2x2x1xf32> to vector<2x2x8xf32>
    %24 = arith.subf %20, %23 : vector<2x2x8xf32>
    %25 = math.exp %24 : vector<2x2x8xf32>
    %cst_15 = arith.constant dense<0.000000e+00> : vector<2x2xf32>
    %26 = vector.multi_reduction <add>, %25, %cst_15 [2] : vector<2x2x8xf32> to vector<2x2xf32>
    %27 = vector.shape_cast %26 : vector<2x2xf32> to vector<2x2x1xf32>
    %28 = tpu.reciprocal %27 {approx = true} : vector<2x2x1xf32> -> vector<2x2x1xf32>
    %29 = vector.broadcast %28 : vector<2x2x1xf32> to vector<2x2x8xf32>
    %30 = arith.mulf %25, %29 : vector<2x2x8xf32>
    %31 = arith.truncf %30 : vector<2x2x8xf32> to vector<2x2x8xbf16>
    %cst_16 = arith.constant dense<0.000000e+00> : vector<2x2x32xf32>
    %32 = tpu.matmul %31, %0, %cst_16 {dimension_numbers = #tpu.dot_dimension_numbers<[2], [1], [1], [2], [0, 0, 0, 1, 1, 2], [0], [0]>} : vector<2x2x8xbf16>, vector<2x8x32xbf16>, vector<2x2x32xf32> -> vector<2x2x32xf32>
    %33 = vector.extract_strided_slice %32 {offsets = [0, 0, 0], sizes = [2, 1, 32], strides = [1, 1, 1]} : vector<2x2x32xf32> to vector<2x1x32xf32>
    %34 = vector.shape_cast %33 : vector<2x1x32xf32> to vector<2x32xf32>
    %35 = arith.truncf %34 : vector<2x32xf32> to vector<2x32xbf16>
    %c0_17 = arith.constant 0 : index
    %c0_18 = arith.constant 0 : index
    %c0_19 = arith.constant 0 : index
    %36 = vector.load %arg7[%c0_17, %c0_18, %c0_19] : memref<2x32x128xbf16, #tpu.memory_space<vmem>>, vector<1x32x128xbf16>
    %37 = vector.shape_cast %36 : vector<1x32x128xbf16> to vector<32x128xbf16>
    %cst_20 = arith.constant dense<0.000000e+00> : vector<2x128xf32>
    %38 = tpu.matmul %35, %37, %cst_20 {dimension_numbers = #tpu.dot_dimension_numbers<[1], [0], [0], [1], [0, 0, 1, 1], [], []>} : vector<2x32xbf16>, vector<32x128xbf16>, vector<2x128xf32> -> vector<2x128xf32>
    %39 = vector.extract_strided_slice %32 {offsets = [0, 1, 0], sizes = [2, 1, 32], strides = [1, 1, 1]} : vector<2x2x32xf32> to vector<2x1x32xf32>
    %40 = vector.shape_cast %39 : vector<2x1x32xf32> to vector<2x32xf32>
    %41 = arith.truncf %40 : vector<2x32xf32> to vector<2x32xbf16>
    %c1 = arith.constant 1 : index
    %c0_21 = arith.constant 0 : index
    %c0_22 = arith.constant 0 : index
    %42 = vector.load %arg7[%c1, %c0_21, %c0_22] : memref<2x32x128xbf16, #tpu.memory_space<vmem>>, vector<1x32x128xbf16>
    %43 = vector.shape_cast %42 : vector<1x32x128xbf16> to vector<32x128xbf16>
    %cst_23 = arith.constant dense<0.000000e+00> : vector<2x128xf32>
    %44 = tpu.matmul %41, %43, %cst_23 {dimension_numbers = #tpu.dot_dimension_numbers<[1], [0], [0], [1], [0, 0, 1, 1], [], []>} : vector<2x32xbf16>, vector<32x128xbf16>, vector<2x128xf32> -> vector<2x128xf32>
    %45 = arith.addf %38, %44 : vector<2x128xf32>
    %c0_24 = arith.constant 0 : index
    %c0_25 = arith.constant 0 : index
    %46 = vector.load %arg8[%c0_24, %c0_25] : memref<1x128xf32, #tpu.memory_space<vmem>>, vector<1x128xf32>
    %47 = vector.broadcast %46 : vector<1x128xf32> to vector<2x128xf32>
    %48 = arith.addf %45, %47 : vector<2x128xf32>
    %c0_26 = arith.constant 0 : index
    %c0_27 = arith.constant 0 : index
    %49 = vector.load %arg9[%c0_26, %c0_27] : memref<2x128xf32, #tpu.memory_space<vmem>>, vector<2x128xf32>
    tpu.vector_store %arg9[%c0_26, %c0_27], %48 {strides = array<i32>} : memref<2x128xf32, #tpu.memory_space<vmem>>, vector<2x128xf32>,
    return
  }
  func.func @transform_0(%arg0: i32) -> (i32, i32, i32) {
    %c0_i32 = arith.constant 0 : i32
    %c0_i32_0 = arith.constant 0 : i32
    %c0_i32_1 = arith.constant 0 : i32
    return %arg0, %c0_i32, %c0_i32_0 : i32, i32, i32
  }
  func.func @transform_1(%arg0: i32) -> (i32, i32) {
    %c0_i32 = arith.constant 0 : i32
    %c0_i32_0 = arith.constant 0 : i32
    return %arg0, %c0_i32 : i32, i32
  }
  func.func @transform_2(%arg0: i32) -> (i32, i32) {
    %c0_i32 = arith.constant 0 : i32
    %c0_i32_0 = arith.constant 0 : i32
    %c0_i32_1 = arith.constant 0 : i32
    return %c0_i32, %c0_i32_0 : i32, i32
  }
  func.func @transform_3(%arg0: i32) -> (i32, i32) {
    %c0_i32 = arith.constant 0 : i32
    %c0_i32_0 = arith.constant 0 : i32
    %c0_i32_1 = arith.constant 0 : i32
    return %c0_i32, %c0_i32_0 : i32, i32
  }
  func.func @transform_4(%arg0: i32) -> (i32, i32) {
    %c0_i32 = arith.constant 0 : i32
    %c0_i32_0 = arith.constant 0 : i32
    %c0_i32_1 = arith.constant 0 : i32
    return %c0_i32, %c0_i32_0 : i32, i32
  }
  func.func @transform_5(%arg0: i32) -> (i32, i32) {
    %c0_i32 = arith.constant 0 : i32
    %c0_i32_0 = arith.constant 0 : i32
    %c0_i32_1 = arith.constant 0 : i32
    return %c0_i32, %c0_i32_0 : i32, i32
  }
  func.func @transform_6(%arg0: i32) -> (i32, i32, i32) {
    %c0_i32 = arith.constant 0 : i32
    %c0_i32_0 = arith.constant 0 : i32
    %c0_i32_1 = arith.constant 0 : i32
    %c0_i32_2 = arith.constant 0 : i32
    return %c0_i32, %c0_i32_0, %c0_i32_1 : i32, i32, i32
  }
  func.func @transform_7(%arg0: i32) -> (i32, i32) {
    %c0_i32 = arith.constant 0 : i32
    %c0_i32_0 = arith.constant 0 : i32
    %c0_i32_1 = arith.constant 0 : i32
    return %c0_i32, %c0_i32_0 : i32, i32
  }
  func.func @transform_8(%arg0: i32) -> (i32, i32) {
    %c0_i32 = arith.constant 0 : i32
    %c0_i32_0 = arith.constant 0 : i32
    return %arg0, %c0_i32 : i32, i32
  }
}

module attributes {stable_mosaic.version = 11 : i64} {
  func.func @attflat_kernel(%arg0: i32, %arg1: memref<2x8x32xbf16, #tpu.memory_space<vmem>>, %arg2: memref<2x8xf32, #tpu.memory_space<vmem>>, %arg3: memref<32x64xbf16, #tpu.memory_space<vmem>>, %arg4: memref<1x64xf32, #tpu.memory_space<vmem>>, %arg5: memref<64x2xbf16, #tpu.memory_space<vmem>>, %arg6: memref<1x2xf32, #tpu.memory_space<vmem>>, %arg7: memref<2x32x128xbf16, #tpu.memory_space<vmem>>, %arg8: memref<1x128xf32, #tpu.memory_space<vmem>>, %arg9: memref<2x128xf32, #tpu.memory_space<vmem>>) attributes {dimension_semantics = [#tpu.dimension_semantics<parallel>], iteration_bounds = array<i64: 1>, scalar_prefetch = 0 : i64, scratch_operands = 0 : i64, tpu.core_type = #tpu.core_type<tc>, window_params = [{transform_indices = @transform_0, window_bounds = array<i64: 2, 8, 32>}, {transform_indices = @transform_1, window_bounds = array<i64: 2, 8>}, {pipeline_mode = #tpu.pipeline_mode<synchronous>, transform_indices = @transform_2, window_bounds = array<i64: 32, 64>}, {pipeline_mode = #tpu.pipeline_mode<synchronous>, transform_indices = @transform_3, window_bounds = array<i64: 1, 64>}, {pipeline_mode = #tpu.pipeline_mode<synchronous>, transform_indices = @transform_4, window_bounds = array<i64: 64, 2>}, {pipeline_mode = #tpu.pipeline_mode<synchronous>, transform_indices = @transform_5, window_bounds = array<i64: 1, 2>}, {pipeline_mode = #tpu.pipeline_mode<synchronous>, transform_indices = @transform_6, window_bounds = array<i64: 2, 32, 128>}, {pipeline_mode = #tpu.pipeline_mode<synchronous>, transform_indices = @transform_7, window_bounds = array<i64: 1, 128>}, {transform_indices = @transform_8, window_bounds = array<i64: 2, 128>}]} {
    %c0 = arith.constant 0 : index
    %c0_0 = arith.constant 0 : index
    %c0_1 = arith.constant 0 : index
    %0 = vector.load %arg1[%c0, %c0_0, %c0_1] : memref<2x8x32xbf16, #tpu.memory_space<vmem>>, vector<2x8x32xbf16>
    %1 = vector.shape_cast %0 : vector<2x8x32xbf16> to vector<16x32xbf16>
    %c0_2 = arith.constant 0 : index
    %c0_3 = arith.constant 0 : index
    %2 = vector.load %arg3[%c0_2, %c0_3] : memref<32x64xbf16, #tpu.memory_space<vmem>>, vector<32x64xbf16>
    %cst = arith.constant dense<0.000000e+00> : vector<16x64xf32>
    %3 = tpu.matmul %1, %2, %cst {dimension_numbers = #tpu.dot_dimension_numbers<[1], [0], [0], [1], [0, 0, 1, 1], [], []>} : vector<16x32xbf16>, vector<32x64xbf16>, vector<16x64xf32> -> vector<16x64xf32>
    %c0_4 = arith.constant 0 : index
    %c0_5 = arith.constant 0 : index
    %4 = vector.load %arg4[%c0_4, %c0_5] : memref<1x64xf32, #tpu.memory_space<vmem>>, vector<1x64xf32>
    %5 = vector.broadcast %4 : vector<1x64xf32> to vector<16x64xf32>
    %6 = arith.addf %3, %5 : vector<16x64xf32>
    %cst_6 = arith.constant 0.000000e+00 : f32
    %7 = vector.broadcast %cst_6 : f32 to vector<16x64xf32>
    %8 = arith.maximumf %6, %7 : vector<16x64xf32>
    %9 = arith.truncf %8 : vector<16x64xf32> to vector<16x64xbf16>
    %c0_7 = arith.constant 0 : index
    %c0_8 = arith.constant 0 : index
    %10 = vector.load %arg5[%c0_7, %c0_8] : memref<64x2xbf16, #tpu.memory_space<vmem>>, vector<64x2xbf16>
    %cst_9 = arith.constant dense<0.000000e+00> : vector<16x2xf32>
    %11 = tpu.matmul %9, %10, %cst_9 {dimension_numbers = #tpu.dot_dimension_numbers<[1], [0], [0], [1], [0, 0, 1, 1], [], []>} : vector<16x64xbf16>, vector<64x2xbf16>, vector<16x2xf32> -> vector<16x2xf32>
    %c0_10 = arith.constant 0 : index
    %c0_11 = arith.constant 0 : index
    %12 = vector.load %arg6[%c0_10, %c0_11] : memref<1x2xf32, #tpu.memory_space<vmem>>, vector<1x2xf32>
    %13 = vector.broadcast %12 : vector<1x2xf32> to vector<16x2xf32>
    %14 = arith.addf %11, %13 : vector<16x2xf32>
    %15 = vector.shape_cast %14 : vector<16x2xf32> to vector<2x8x2xf32>
    %16 = tpu.transpose %15, [0, 2, 1] : vector<2x8x2xf32> -> vector<2x2x8xf32>
    %c0_12 = arith.constant 0 : index
    %c0_13 = arith.constant 0 : index
    %17 = vector.load %arg2[%c0_12, %c0_13] : memref<2x8xf32, #tpu.memory_space<vmem>>, vector<2x8xf32>
    %18 = vector.shape_cast %17 : vector<2x8xf32> to vector<2x1x8xf32>
    %19 = vector.broadcast %18 : vector<2x1x8xf32> to vector<2x2x8xf32>
    %20 = arith.addf %16, %19 : vector<2x2x8xf32>
    %cst_14 = arith.constant dense<0xFF800000> : vector<2x2xf32>
    %21 = vector.multi_reduction <maximumf>, %20, %cst_14 [2] : vector<2x2x8xf32> to vector<2x2xf32>
    %22 = vector.shape_cast %21 : vector<2x2xf32> to vector<2x2x1xf32>
    %23 = vector.broadcast %22 : vector<2x2x1xf32> to vector<2x2x8xf32>
    %24 = arith.subf %20, %23 : vector<2x2x8xf32>
    %25 = math.exp %24 : vector<2x2x8xf32>
    %cst_15 = arith.constant dense<0.000000e+00> : vector<2x2xf32>
    %26 = vector.multi_reduction <add>, %25, %cst_15 [2] : vector<2x2x8xf32> to vector<2x2xf32>
    %27 = vector.shape_cast %26 : vector<2x2xf32> to vector<2x2x1xf32>
    %28 = tpu.reciprocal %27 {approx = true} : vector<2x2x1xf32> -> vector<2x2x1xf32>
    %29 = vector.broadcast %28 : vector<2x2x1xf32> to vector<2x2x8xf32>
    %30 = arith.mulf %25, %29 : vector<2x2x8xf32>
    %31 = arith.truncf %30 : vector<2x2x8xf32> to vector<2x2x8xbf16>
    %cst_16 = arith.constant dense<0.000000e+00> : vector<2x2x32xf32>
    %32 = tpu.matmul %31, %0, %cst_16 {dimension_numbers = #tpu.dot_dimension_numbers<[2], [1], [1], [2], [0, 0, 0, 1, 1, 2], [0], [0]>} : vector<2x2x8xbf16>, vector<2x8x32xbf16>, vector<2x2x32xf32> -> vector<2x2x32xf32>
    %33 = vector.extract_strided_slice %32 {offsets = [0, 0, 0], sizes = [2, 1, 32], strides = [1, 1, 1]} : vector<2x2x32xf32> to vector<2x1x32xf32>
    %34 = vector.shape_cast %33 : vector<2x1x32xf32> to vector<2x32xf32>
    %35 = arith.truncf %34 : vector<2x32xf32> to vector<2x32xbf16>
    %c0_17 = arith.constant 0 : index
    %c0_18 = arith.constant 0 : index
    %c0_19 = arith.constant 0 : index
    %36 = vector.load %arg7[%c0_17, %c0_18, %c0_19] : memref<2x32x128xbf16, #tpu.memory_space<vmem>>, vector<1x32x128xbf16>
    %37 = vector.shape_cast %36 : vector<1x32x128xbf16> to vector<32x128xbf16>
    %cst_20 = arith.constant dense<0.000000e+00> : vector<2x128xf32>
    %38 = tpu.matmul %35, %37, %cst_20 {dimension_numbers = #tpu.dot_dimension_numbers<[1], [0], [0], [1], [0, 0, 1, 1], [], []>} : vector<2x32xbf16>, vector<32x128xbf16>, vector<2x128xf32> -> vector<2x128xf32>
    %39 = vector.extract_strided_slice %32 {offsets = [0, 1, 0], sizes = [2, 1, 32], strides = [1, 1, 1]} : vector<2x2x32xf32> to vector<2x1x32xf32>
    %40 = vector.shape_cast %39 : vector<2x1x32xf32> to vector<2x32xf32>
    %41 = arith.truncf %40 : vector<2x32xf32> to vector<2x32xbf16>
    %c1 = arith.constant 1 : index
    %c0_21 = arith.constant 0 : index
    %c0_22 = arith.constant 0 : index
    %42 = vector.load %arg7[%c1, %c0_21, %c0_22] : memref<2x32x128xbf16, #tpu.memory_space<vmem>>, vector<1x32x128xbf16>
    %43 = vector.shape_cast %42 : vector<1x32x128xbf16> to vector<32x128xbf16>
    %cst_23 = arith.constant dense<0.000000e+00> : vector<2x128xf32>
    %44 = tpu.matmul %41, %43, %cst_23 {dimension_numbers = #tpu.dot_dimension_numbers<[1], [0], [0], [1], [0, 0, 1, 1], [], []>} : vector<2x32xbf16>, vector<32x128xbf16>, vector<2x128xf32> -> vector<2x128xf32>
    %45 = arith.addf %38, %44 : vector<2x128xf32>
    %c0_24 = arith.constant 0 : index
    %c0_25 = arith.constant 0 : index
    %46 = vector.load %arg8[%c0_24, %c0_25] : memref<1x128xf32, #tpu.memory_space<vmem>>, vector<1x128xf32>
    %47 = vector.broadcast %46 : vector<1x128xf32> to vector<2x128xf32>
    %48 = arith.addf %45, %47 : vector<2x128xf32>
    %c0_26 = arith.constant 0 : index
    %c0_27 = arith.constant 0 : index
    %49 = vector.load %arg9[%c0_26, %c0_27] : memref<2x128xf32, #tpu.memory_space<vmem>>, vector<2x128xf32>
    tpu.vector_store %arg9[%c0_26, %c0_27], %48 {strides = array<i32>} : memref<2x128xf32, #tpu.memory_space<vmem>>, vector<2x128xf32>,
    return
  }
  func.func @transform_0(%arg0: i32) -> (i32, i32, i32) {
    %c0_i32 = arith.constant 0 : i32
    %c0_i32_0 = arith.constant 0 : i32
    %c0_i32_1 = arith.constant 0 : i32
    return %arg0, %c0_i32, %c0_i32_0 : i32, i32, i32
  }
  func.func @transform_1(%arg0: i32) -> (i32, i32) {
    %c0_i32 = arith.constant 0 : i32
    %c0_i32_0 = arith.constant 0 : i32
    return %arg0, %c0_i32 : i32, i32
  }
  func.func @transform_2(%arg0: i32) -> (i32, i32) {
    %c0_i32 = arith.constant 0 : i32
    %c0_i32_0 = arith.constant 0 : i32
    %c0_i32_1 = arith.constant 0 : i32
    return %c0_i32, %c0_i32_0 : i32, i32
  }
  func.func @transform_3(%arg0: i32) -> (i32, i32) {
    %c0_i32 = arith.constant 0 : i32
    %c0_i32_0 = arith.constant 0 : i32
    %c0_i32_1 = arith.constant 0 : i32
    return %c0_i32, %c0_i32_0 : i32, i32
  }
  func.func @transform_4(%arg0: i32) -> (i32, i32) {
    %c0_i32 = arith.constant 0 : i32
    %c0_i32_0 = arith.constant 0 : i32
    %c0_i32_1 = arith.constant 0 : i32
    return %c0_i32, %c0_i32_0 : i32, i32
  }
  func.func @transform_5(%arg0: i32) -> (i32, i32) {
    %c0_i32 = arith.constant 0 : i32
    %c0_i32_0 = arith.constant 0 : i32
    %c0_i32_1 = arith.constant 0 : i32
    return %c0_i32, %c0_i32_0 : i32, i32
  }
  func.func @transform_6(%arg0: i32) -> (i32, i32, i32) {
    %c0_i32 = arith.constant 0 : i32
    %c0_i32_0 = arith.constant 0 : i32
    %c0_i32_1 = arith.constant 0 : i32
    %c0_i32_2 = arith.constant 0 : i32
    return %c0_i32, %c0_i32_0, %c0_i32_1 : i32, i32, i32
  }
  func.func @transform_7(%arg0: i32) -> (i32, i32) {
    %c0_i32 = arith.constant 0 : i32
    %c0_i32_0 = arith.constant 0 : i32
    %c0_i32_1 = arith.constant 0 : i32
    return %c0_i32, %c0_i32_0 : i32, i32
  }
  func.func @transform_8(%arg0: i32) -> (i32, i32) {
    %c0_i32 = arith.constant 0 : i32
    %c0_i32_0 = arith.constant 0 : i32
    return %arg0, %c0_i32 : i32, i32
  }
}

</mosaic_0001>

<llo_original>
// kernel: tpu_custom_call.1
$region0: #{tpu_custom_call.1}
  #allocation0 [shape = 'u32[]', space=smem, size = 0x4, offset = 0x4, fixed_abs, tag = 'smem constant byte address 0x4 - core index']
  #allocation1 [shape = 'u32[144,128]{1,0:T(1,128)}', space=vmem, size = 0x12000, scoped, tag = 'internal scratch']
  %s0 = inlined_call_operand.hbm [shape: bf16[2,8,32], index: 0, kind: input, shape index: {}]
  %s1 = inlined_call_operand.vmem [shape: f32[2,8], index: 1, kind: input, shape index: {}]
  %s2 = inlined_call_operand.vmem [shape: bf16[32,64], index: 2, kind: input, shape index: {}]
  %s3 = inlined_call_operand.vmem [shape: f32[1,64], index: 3, kind: input, shape index: {}]
  %s4 = inlined_call_operand.vmem [shape: bf16[64,2], index: 4, kind: input, shape index: {}]
  %s5 = inlined_call_operand.vmem [shape: f32[1,2], index: 5, kind: input, shape index: {}]
  %s6 = inlined_call_operand.vmem [shape: bf16[2,32,128], index: 6, kind: input, shape index: {}]
  %s7 = inlined_call_operand.vmem [shape: f32[1,128], index: 7, kind: input, shape index: {}]
  %s8 = inlined_call_operand.hbm [shape: f32[2,128], index: 8, kind: output, shape index: {}]
  %s9 = sld [smem:[#allocation0]]
  $region46: #{tpu_custom_call.1} parent=0
    _
  %s11 = ssub.s32 1, %s9
  %s12 = scalar_select 0, %s11, %s9
  $region1: #{tpu_custom_call.1} parent=0
    #allocation2 [shape = 'u8[4096]{0}', space=vmem, size = 0x1000, scoped, tag = 'input window, operand 0, single buffered']
    #allocation3 [shape = 's32[1]{0}', space=sflag, size = 0x4, scoped, tag = 'scoped memory for tpu_custom_call.1']
    #allocation4 [shape = 's32[1]{0}', space=sflag, size = 0x4, scoped, tag = 'scoped memory for tpu_custom_call.1']
    #allocation5 [shape = 'u8[1024]{0}', space=vmem, size = 0x400, scoped, tag = 'output window, operand 0, single buffered']
    %13 = vsyncpa [#allocation3], 0
    %14 = vsyncpa [#allocation4], 0
    // Predicated region
    $region2: #{tpu_custom_call.1} parent=1 // pred_check
      _
    $region3: #{tpu_custom_call.1} parent=1 // pred_check_branch
      %16 = sbr.rel (0) target = $region5
    $region4: #{tpu_custom_call.1} parent=1 // pred_region
      %s18 = ssub.s32 128, 128
      %19 = vsyncadd [#allocation3], %s18
      %s20 = sshll.u32 [#allocation2], 4
      %s21 = int_to_ptr.vmem [resolvable:$true] %s20
      %26 = dma.hbm_to_vmem [thread:$0]  %s0, 128, %s21, [#allocation3], 64, 64, 4
    $region5: #{tpu_custom_call.1} parent=1 // pred_fallthru
      _
    // Predicated region
    $region6: #{tpu_custom_call.1} parent=1 // pred_check
      _
    $region7: #{tpu_custom_call.1} parent=1 // pred_check_branch
      %28 = sbr.rel (0) target = $region9
    $region8: #{tpu_custom_call.1} parent=1 // pred_region
      _
    $region9: #{tpu_custom_call.1} parent=1 // pred_fallthru
      _
    // Predicated region
    $region10: #{tpu_custom_call.1} parent=1 // pred_check
      _
    $region11: #{tpu_custom_call.1} parent=1 // pred_check_branch
      %30 = sbr.rel (0) target = $region13
    $region12: #{tpu_custom_call.1} parent=1 // pred_region
      _
    $region13: #{tpu_custom_call.1} parent=1 // pred_fallthru
      _
    // Predicated region
    $region14: #{tpu_custom_call.1} parent=1 // pred_check
      _
    $region15: #{tpu_custom_call.1} parent=1 // pred_check_branch
      %32 = sbr.rel (0) target = $region17
    $region16: #{tpu_custom_call.1} parent=1 // pred_region
      _
    $region17: #{tpu_custom_call.1} parent=1 // pred_fallthru
      _
    // Predicated region
    $region18: #{tpu_custom_call.1} parent=1 // pred_check
      _
    $region19: #{tpu_custom_call.1} parent=1 // pred_check_branch
      %34 = sbr.rel (0) target = $region21
    $region20: #{tpu_custom_call.1} parent=1 // pred_region
      _
    $region21: #{tpu_custom_call.1} parent=1 // pred_fallthru
      _
    // Predicated region
    $region22: #{tpu_custom_call.1} parent=1 // pred_check
      _
    $region23: #{tpu_custom_call.1} parent=1 // pred_check_branch
      %36 = sbr.rel (0) target = $region25
    $region24: #{tpu_custom_call.1} parent=1 // pred_region
      _
    $region25: #{tpu_custom_call.1} parent=1 // pred_fallthru
      _
    // Predicated region
    $region26: #{tpu_custom_call.1} parent=1 // pred_check
      _
    $region27: #{tpu_custom_call.1} parent=1 // pred_check_branch
      %38 = sbr.rel (0) target = $region29
    $region28: #{tpu_custom_call.1} parent=1 // pred_region
      _
    $region29: #{tpu_custom_call.1} parent=1 // pred_fallthru
      _
    // Predicated region
    $region30: #{tpu_custom_call.1} parent=1 // pred_check
      _
    $region31: #{tpu_custom_call.1} parent=1 // pred_check_branch
      %40 = sbr.rel (0) target = $region33
    $region32: #{tpu_custom_call.1} parent=1 // pred_region
      _
    $region33: #{tpu_custom_call.1} parent=1 // pred_fallthru
      _
    // Predicated region
    $region34: #{tpu_custom_call.1} parent=1 // pred_check
      _
    $region35: #{tpu_custom_call.1} parent=1 // pred_check_branch
      %42 = sbr.rel (0) target = $region37
    $region36: #{tpu_custom_call.1} parent=1 // pred_region
      %43 = dma.done [#allocation3], 128
    $region37: #{tpu_custom_call.1} parent=1 // pred_fallthru
      _
    %v45 = vld [vmem:[#allocation2] sm:$0xf]
    %v46 = vld [vmem:[#allocation2 + $0x4] sm:$0xf]
    %v47 = vld [vmem:[%s2] sm:$0xf]
    %v48 = vld [vmem:[%s2 + $0x4] sm:$0xf]
    %v49 = vld [vmem:[%s2 + $0x8] sm:$0xf]
    %v50 = vld [vmem:[%s2 + $0xc] sm:$0xf]
    %v51 = vld [vmem:[%s3] sm:$0x1]
    %v53 = vlaneseq
    %v54 = vshrl.u32 %v53, 7
    %v55 = vsub.s32 0, %v54
    %v56 = vrot.slane %v51, %v55
    %v60 = vunpack.c.l.b16 %v45
    %v61 = vunpack.c.l.b16 %v46
    %v62 = vpack.c.b16 %v61, %v60
    %v67 = vunpack.c.l.b16 %v47
    %v68 = vunpack.c.l.b16 %v48
    %v69 = vunpack.c.l.b16 %v49
    %v70 = vunpack.c.l.b16 %v50
    %v71 = vpack.c.b16 %v68, %v67
    %v72 = vpack.c.b16 %v70, %v69
    %vm75 = vcmask 261120
    %v77 = vsel %vm75, %v62, 0
    %79 = vmatprep.subr.bf16.mxu0 0
    %80 = vmatpush1.bf16.msra.mxu0 %v71
    %81 = vmatprep.subr.bf16.mxu0 0
    %82 = vmatpush1.bf16.msra.mxu0 %v72
    %83 = vmatprep.subr.bf16.mxu0 0
    %84 = vmatpush1.bf16.msra.mxu0 0
    %85 = vmatprep.subr.bf16.mxu0 0
    %86 = vmatpush1.bf16.msra.mxu0 0
    %87 = vmatprep.subr.bf16.mxu0 0
    %88 = vmatpush1.bf16.msra.mxu0 0
    %89 = vmatprep.subr.bf16.mxu0 0
    %90 = vmatpush1.bf16.msra.mxu0 0
    %91 = vmatprep.subr.bf16.mxu0 0
    %92 = vmatpush1.bf16.msra.mxu0 0
    %93 = vmatprep.subr.bf16.mxu0 0
    %94 = vmatpush1.bf16.msra.mxu0 0
    %95 = vmatprep.subr.bf16.mxu0 0
    %96 = vmatpush1.bf16.msra.mxu0 0
    %97 = vmatprep.subr.bf16.mxu0 0
    %98 = vmatpush1.bf16.msra.mxu0 0
    %99 = vmatprep.subr.bf16.mxu0 0
    %100 = vmatpush1.bf16.msra.mxu0 0
    %101 = vmatprep.subr.bf16.mxu0 0
    %102 = vmatpush1.bf16.msra.mxu0 0
    %103 = vmatprep.subr.bf16.mxu0 0
    %104 = vmatpush1.bf16.msra.mxu0 0
    %105 = vmatprep.subr.bf16.mxu0 0
    %106 = vmatpush1.bf16.msra.mxu0 0
    %107 = vmatprep.subr.bf16.mxu0 0
    %108 = vmatpush1.bf16.msra.mxu0 0
    %109 = vmatprep.subr.bf16.mxu0 0
    %110 = vmatpush1.bf16.msra.mxu0 0
    %111 = vmatprep.mubr.bf16.mxu0 0
    %112 = vmatmul.mubr.bf16.gmra.mrb[0].mxu0 %v77
    %v113 = vpop.f32.mrb[0].mxu0
    %v114 = vadd.f32 %v56, %v113
    %v115 = vpop.f32.mrb[0].mxu0
    %v116 = vpop.f32.mrb[0].mxu0
    %v117 = vadd.f32 %v56, %v116
    %v118 = vpop.f32.mrb[0].mxu0
    %119 = vdwg.mxu0
    %v120 = vmax.f32 %v114, 0.0
    %v121 = vmax.f32 %v117, 0.0
    %v122 = vpack.c.bf16 %v121, %v120
    %v123 = vld [vmem:[%s4] sm:$0xf]
    %v124 = vld [vmem:[%s4 + $0x4] sm:$0xf]
    %v125 = vld [vmem:[%s4 + $0x8] sm:$0xf]
    %v126 = vld [vmem:[%s4 + $0xc] sm:$0xf]
    %v127 = vld [vmem:[%s4 + $0x10] sm:$0xf]
    %v128 = vld [vmem:[%s4 + $0x14] sm:$0xf]
    %v129 = vld [vmem:[%s4 + $0x18] sm:$0xf]
    %v130 = vld [vmem:[%s4 + $0x1c] sm:$0xf]
    %v131 = vld [vmem:[%s5] sm:$0x1]
    %v133 = vlaneseq
    %v134 = vshrl.u32 %v133, 7
    %v135 = vsub.s32 0, %v134
    %v136 = vrot.slane %v131, %v135
    %v146 = vunpack.c.l.b16 %v123
    %v147 = vunpack.c.l.b16 %v124
    %v148 = vunpack.c.l.b16 %v125
    %v149 = vunpack.c.l.b16 %v126
    %v150 = vunpack.c.l.b16 %v127
    %v151 = vunpack.c.l.b16 %v128
    %v152 = vunpack.c.l.b16 %v129
    %v153 = vunpack.c.l.b16 %v130
    %v154 = vpack.c.b16 %v147, %v146
    %v155 = vpack.c.b16 %v149, %v148
    %v156 = vpack.c.b16 %v151, %v150
    %v157 = vpack.c.b16 %v153, %v152
    %vm162 = vcmask 523264
    %v164 = vsel %vm162, %v122, 0
    %166 = vmatprep.subr.bf16.mxu0 0
    %167 = vmatpush1.bf16.msra.mxu0 %v154
    %168 = vmatprep.subr.bf16.mxu0 0
    %169 = vmatpush1.bf16.msra.mxu0 %v155
    %170 = vmatprep.subr.bf16.mxu0 0
    %171 = vmatpush1.bf16.msra.mxu0 %v156
    %172 = vmatprep.subr.bf16.mxu0 0
    %173 = vmatpush1.bf16.msra.mxu0 %v157
    %174 = vmatprep.subr.bf16.mxu0 0
    %175 = vmatpush1.bf16.msra.mxu0 0
    %176 = vmatprep.subr.bf16.mxu0 0
    %177 = vmatpush1.bf16.msra.mxu0 0
    %178 = vmatprep.subr.bf16.mxu0 0
    %179 = vmatpush1.bf16.msra.mxu0 0
    %180 = vmatprep.subr.bf16.mxu0 0
    %181 = vmatpush1.bf16.msra.mxu0 0
    %182 = vmatprep.subr.bf16.mxu0 0
    %183 = vmatpush1.bf16.msra.mxu0 0
    %184 = vmatprep.subr.bf16.mxu0 0
    %185 = vmatpush1.bf16.msra.mxu0 0
    %186 = vmatprep.subr.bf16.mxu0 0
    %187 = vmatpush1.bf16.msra.mxu0 0
    %188 = vmatprep.subr.bf16.mxu0 0
    %189 = vmatpush1.bf16.msra.mxu0 0
    %190 = vmatprep.subr.bf16.mxu0 0
    %191 = vmatpush1.bf16.msra.mxu0 0
    %192 = vmatprep.subr.bf16.mxu0 0
    %193 = vmatpush1.bf16.msra.mxu0 0
    %194 = vmatprep.subr.bf16.mxu0 0
    %195 = vmatpush1.bf16.msra.mxu0 0
    %196 = vmatprep.subr.bf16.mxu0 0
    %197 = vmatpush1.bf16.msra.mxu0 0
    %198 = vmatprep.mubr.bf16.mxu0 0
    %199 = vmatmul.mubr.bf16.gmra.mrb[0].mxu0 %v164
    %v200 = vpop.f32.mrb[0].mxu0
    %v201 = vadd.f32 %v136, %v200
    %v202 = vpop.f32.mrb[0].mxu0
    %v203 = vpop.f32.mrb[0].mxu0
    %v204 = vadd.f32 %v136, %v203
    %v205 = vpop.f32.mrb[0].mxu0
    %206 = vdwg.mxu0
    %207 = vxpose.xlu0.b32.start [1/16] %v201, 128
    %208 = vxpose.xlu0.b32.cont [2/16] 0.0, 128
    %209 = vxpose.xlu0.b32.cont [3/16] 0.0, 128
    %210 = vxpose.xlu0.b32.cont [4/16] 0.0, 128
    %211 = vxpose.xlu0.b32.cont [5/16] 0.0, 128
    %212 = vxpose.xlu0.b32.cont [6/16] 0.0, 128
    %213 = vxpose.xlu0.b32.cont [7/16] 0.0, 128
    %214 = vxpose.xlu0.b32.cont [8/16] 0.0, 128
    %215 = vxpose.xlu0.b32.cont [9/16] 0.0, 128
    %216 = vxpose.xlu0.b32.cont [10/16] 0.0, 128
    %217 = vxpose.xlu0.b32.cont [11/16] 0.0, 128
    %218 = vxpose.xlu0.b32.cont [12/16] 0.0, 128
    %219 = vxpose.xlu0.b32.cont [13/16] 0.0, 128
    %220 = vxpose.xlu0.b32.cont [14/16] 0.0, 128
    %221 = vxpose.xlu0.b32.cont [15/16] 0.0, 128
    %222 = vxpose.xlu0.b32.end [16/16] 0.0, 128
    %v223 = vpop.trf.xlu0
    %v224 = vpop.trf.xlu0
    %v225 = vpop.trf.xlu0
    %v226 = vpop.trf.xlu0
    %v227 = vpop.trf.xlu0
    %v228 = vpop.trf.xlu0
    %v229 = vpop.trf.xlu0
    %v230 = vpop.trf.xlu0
    %v231 = vpop.trf.xlu0
    %v232 = vpop.trf.xlu0
    %v233 = vpop.trf.xlu0
    %v234 = vpop.trf.xlu0
    %v235 = vpop.trf.xlu0
    %v236 = vpop.trf.xlu0
    %v237 = vpop.trf.xlu0
    %v238 = vpop.trf.xlu0
    %239 = vxpose.xlu0.b32.start [1/16] %v204, 128
    %240 = vxpose.xlu0.b32.cont [2/16] 0.0, 128
    %241 = vxpose.xlu0.b32.cont [3/16] 0.0, 128
    %242 = vxpose.xlu0.b32.cont [4/16] 0.0, 128
    %243 = vxpose.xlu0.b32.cont [5/16] 0.0, 128
    %244 = vxpose.xlu0.b32.cont [6/16] 0.0, 128
    %245 = vxpose.xlu0.b32.cont [7/16] 0.0, 128
    %246 = vxpose.xlu0.b32.cont [8/16] 0.0, 128
    %247 = vxpose.xlu0.b32.cont [9/16] 0.0, 128
    %248 = vxpose.xlu0.b32.cont [10/16] 0.0, 128
    %249 = vxpose.xlu0.b32.cont [11/16] 0.0, 128
    %250 = vxpose.xlu0.b32.cont [12/16] 0.0, 128
    %251 = vxpose.xlu0.b32.cont [13/16] 0.0, 128
    %252 = vxpose.xlu0.b32.cont [14/16] 0.0, 128
    %253 = vxpose.xlu0.b32.cont [15/16] 0.0, 128
    %254 = vxpose.xlu0.b32.end [16/16] 0.0, 128
    %v255 = vpop.trf.xlu0
    %v256 = vpop.trf.xlu0
    %v257 = vpop.trf.xlu0
    %v258 = vpop.trf.xlu0
    %v259 = vpop.trf.xlu0
    %v260 = vpop.trf.xlu0
    %v261 = vpop.trf.xlu0
    %v262 = vpop.trf.xlu0
    %v263 = vpop.trf.xlu0
    %v264 = vpop.trf.xlu0
    %v265 = vpop.trf.xlu0
    %v266 = vpop.trf.xlu0
    %v267 = vpop.trf.xlu0
    %v268 = vpop.trf.xlu0
    %v269 = vpop.trf.xlu0
    %v270 = vpop.trf.xlu0
    %v271 = vld [vmem:[%s1] sm:$0x3]
    %v274 = vunpack.c.l.s4 1966171168
    %v275 = vunpack.c.0.s8 %v274
    %v276 = vlaneseq
    %v277 = vshrl.u32 %v276, 7
    %v278 = vsub.s32 %v275, %v277
    %v279 = vrot.slane %v271, %v278
    %v280 = vcombine.high %v279, %v279
    %v282 = vunpack.c.l.s4 1966171168
    %v283 = vunpack.c.0.s8 %v282
    %v284 = vlaneseq
    %v285 = vshrl.u32 %v284, 7
    %v286 = vsub.s32 %v283, %v285
    %v287 = vrot.slane %v279, %v286
    %v289 = vunpack.c.l.s4 1966171168
    %v290 = vunpack.c.0.s8 %v289
    %v291 = vlaneseq
    %v292 = vshrl.u32 %v291, 7
    %v293 = vsub.s32 %v290, %v292
    %v294 = vrot.slane %v280, %v293
    %v295 = vlaneseq
    %v296 = vshrl.u32 %v295, 7
    %v297 = vsub.s32 0, %v296
    %v298 = vrot.slane %v287, %v297
    %v299 = vlaneseq
    %v300 = vshrl.u32 %v299, 7
    %v301 = vsub.s32 0, %v300
    %v302 = vrot.slane %v294, %v301
    %v305 = vadd.f32 %v223, %v298
    %v306 = vadd.f32 %v255, %v302
    %vm307 = vcmask 58368
    %v308 = vsel %vm307, %v305, -inf
    %309 = vmax.xlane.f32.xlu0 %v308
    %v310 = vpop.xlane.xlu0 %309
    %v311 = vsel %vm307, %v306, -inf
    %312 = vmax.xlane.f32.xlu0 %v311
    %v313 = vpop.xlane.xlu0 %312
    %v314 = vsub.f32 %v305, %v310
    %v315 = vsub.f32 %v306, %v313
    %v316 = vmul.f32 %v314, 1.442695
    %v317 = vpow.pop %v316
    %v318 = vmul.f32 %v315, 1.442695
    %v319 = vpow.pop %v318
    %v320 = vsel %vm307, %v317, 0.0
    %321 = vadd.xlane.f32.xlu0 %v320
    %v322 = vpop.xlane.xlu0 %321
    %v323 = vsel %vm307, %v319, 0.0
    %324 = vadd.xlane.f32.xlu0 %v323
    %v325 = vpop.xlane.xlu0 %324
    %v326 = vrcp.pop %v322
    %v327 = vrcp.pop %v325
    %v328 = vmul.f32 %v317, %v326
    %v329 = vmul.f32 %v319, %v327
    %v330 = vpack.c.bf16 %v328, %v328
    %v331 = vpack.c.bf16 %v329, %v329
    %vm332 = vcmask 64512
    %v334 = vsel %vm332, %v330, 0
    %vm336 = vcmask 1043456
    %v338 = vsel %vm336, %v45, 0
    %340 = vmatprep.subr.bf16.mxu0 0
    %341 = vmatpush1.bf16.msra.mxu0 %v338
    %342 = vmatprep.subr.bf16.mxu0 0
    %343 = vmatpush1.bf16.msra.mxu0 0
    %344 = vmatprep.subr.bf16.mxu0 0
    %345 = vmatpush1.bf16.msra.mxu0 0
    %346 = vmatprep.subr.bf16.mxu0 0
    %347 = vmatpush1.bf16.msra.mxu0 0
    %348 = vmatprep.subr.bf16.mxu0 0
    %349 = vmatpush1.bf16.msra.mxu0 0
    %350 = vmatprep.subr.bf16.mxu0 0
    %351 = vmatpush1.bf16.msra.mxu0 0
    %352 = vmatprep.subr.bf16.mxu0 0
    %353 = vmatpush1.bf16.msra.mxu0 0
    %354 = vmatprep.subr.bf16.mxu0 0
    %355 = vmatpush1.bf16.msra.mxu0 0
    %356 = vmatprep.subr.bf16.mxu0 0
    %357 = vmatpush1.bf16.msra.mxu0 0
    %358 = vmatprep.subr.bf16.mxu0 0
    %359 = vmatpush1.bf16.msra.mxu0 0
    %360 = vmatprep.subr.bf16.mxu0 0
    %361 = vmatpush1.bf16.msra.mxu0 0
    %362 = vmatprep.subr.bf16.mxu0 0
    %363 = vmatpush1.bf16.msra.mxu0 0
    %364 = vmatprep.subr.bf16.mxu0 0
    %365 = vmatpush1.bf16.msra.mxu0 0
    %366 = vmatprep.subr.bf16.mxu0 0
    %367 = vmatpush1.bf16.msra.mxu0 0
    %368 = vmatprep.subr.bf16.mxu0 0
    %369 = vmatpush1.bf16.msra.mxu0 0
    %370 = vmatprep.subr.bf16.mxu0 0
    %371 = vmatpush1.bf16.msra.mxu0 0
    %372 = vmatprep.mubr.bf16.mxu0 0
    %373 = vmatmul.mubr.bf16.gmra.mrb[0].mxu0 %v334
    %v374 = vpop.f32.mrb[0].mxu0
    %v375 = vadd.f32 0.0, %v374
    %v376 = vpop.f32.mrb[0].mxu0
    %v377 = vpop.f32.mrb[0].mxu0
    %v378 = vpop.f32.mrb[0].mxu0
    %379 = vdwg.mxu0
    %v381 = vsel %vm332, %v331, 0
    %v384 = vsel %vm336, %v46, 0
    %386 = vmatprep.subr.bf16.mxu0 0
    %387 = vmatpush1.bf16.msra.mxu0 %v384
    %388 = vmatprep.subr.bf16.mxu0 0
    %389 = vmatpush1.bf16.msra.mxu0 0
    %390 = vmatprep.subr.bf16.mxu0 0
    %391 = vmatpush1.bf16.msra.mxu0 0
    %392 = vmatprep.subr.bf16.mxu0 0
    %393 = vmatpush1.bf16.msra.mxu0 0
    %394 = vmatprep.subr.bf16.mxu0 0
    %395 = vmatpush1.bf16.msra.mxu0 0
    %396 = vmatprep.subr.bf16.mxu0 0
    %397 = vmatpush1.bf16.msra.mxu0 0
    %398 = vmatprep.subr.bf16.mxu0 0
    %399 = vmatpush1.bf16.msra.mxu0 0
    %400 = vmatprep.subr.bf16.mxu0 0
    %401 = vmatpush1.bf16.msra.mxu0 0
    %402 = vmatprep.subr.bf16.mxu0 0
    %403 = vmatpush1.bf16.msra.mxu0 0
    %404 = vmatprep.subr.bf16.mxu0 0
    %405 = vmatpush1.bf16.msra.mxu0 0
    %406 = vmatprep.subr.bf16.mxu0 0
    %407 = vmatpush1.bf16.msra.mxu0 0
    %408 = vmatprep.subr.bf16.mxu0 0
    %409 = vmatpush1.bf16.msra.mxu0 0
    %410 = vmatprep.subr.bf16.mxu0 0
    %411 = vmatpush1.bf16.msra.mxu0 0
    %412 = vmatprep.subr.bf16.mxu0 0
    %413 = vmatpush1.bf16.msra.mxu0 0
    %414 = vmatprep.subr.bf16.mxu0 0
    %415 = vmatpush1.bf16.msra.mxu0 0
    %416 = vmatprep.subr.bf16.mxu0 0
    %417 = vmatpush1.bf16.msra.mxu0 0
    %418 = vmatprep.mubr.bf16.mxu0 0
    %419 = vmatmul.mubr.bf16.gmra.mrb[0].mxu0 %v381
    %v420 = vpop.f32.mrb[0].mxu0
    %v421 = vadd.f32 0.0, %v420
    %v422 = vpop.f32.mrb[0].mxu0
    %v423 = vpop.f32.mrb[0].mxu0
    %v424 = vpop.f32.mrb[0].mxu0
    %425 = vdwg.mxu0
    %v426 = vpack.c.bf16 %v375, %v375
    %v427 = vpack.c.bf16 %v421, %v421
    %v428 = vld [vmem:[%s6] sm:$0xf]
    %v429 = vld [vmem:[%s6 + $0x4] sm:$0xf]
    %v430 = vld [vmem:[%s6 + $0x8] sm:$0xf]
    %v431 = vld [vmem:[%s6 + $0xc] sm:$0xf]
    %s432 = scalar_lea.vmem %s6, 16
    %v433 = vld [vmem:[%s432] sm:$0xf]
    %v434 = vld [vmem:[%s432 + $0x4] sm:$0xf]
    %v435 = vld [vmem:[%s432 + $0x8] sm:$0xf]
    %v436 = vld [vmem:[%s432 + $0xc] sm:$0xf]
    %v439 = vunpack.c.l.b16 %v426
    %v440 = vunpack.c.l.b16 %v427
    %v441 = vrot.slane %v439, 1
    %vm442 = vcmask 1041409
    %v443 = vsel %vm442, %v440, %v441
    %v444 = vpack.c.b16 %v443, %v443
    %v449 = vunpack.c.l.b16 %v433
    %v450 = vunpack.c.l.b16 %v434
    %v451 = vunpack.c.l.b16 %v435
    %v452 = vunpack.c.l.b16 %v436
    %v453 = vpack.c.b16 %v450, %v449
    %v454 = vpack.c.b16 %v452, %v451
    %v458 = vsel %vm75, %v444, 0
    %460 = vmatprep.subr.bf16.mxu0 0
    %461 = vmatpush1.bf16.msra.mxu0 %v453
    %462 = vmatprep.subr.bf16.mxu0 0
    %463 = vmatpush1.bf16.msra.mxu0 %v454
    %464 = vmatprep.subr.bf16.mxu0 0
    %465 = vmatpush1.bf16.msra.mxu0 0
    %466 = vmatprep.subr.bf16.mxu0 0
    %467 = vmatpush1.bf16.msra.mxu0 0
    %468 = vmatprep.subr.bf16.mxu0 0
    %469 = vmatpush1.bf16.msra.mxu0 0
    %470 = vmatprep.subr.bf16.mxu0 0
    %471 = vmatpush1.bf16.msra.mxu0 0
    %472 = vmatprep.subr.bf16.mxu0 0
    %473 = vmatpush1.bf16.msra.mxu0 0
    %474 = vmatprep.subr.bf16.mxu0 0
    %475 = vmatpush1.bf16.msra.mxu0 0
    %476 = vmatprep.subr.bf16.mxu0 0
    %477 = vmatpush1.bf16.msra.mxu0 0
    %478 = vmatprep.subr.bf16.mxu0 0
    %479 = vmatpush1.bf16.msra.mxu0 0
    %480 = vmatprep.subr.bf16.mxu0 0
    %481 = vmatpush1.bf16.msra.mxu0 0
    %482 = vmatprep.subr.bf16.mxu0 0
    %483 = vmatpush1.bf16.msra.mxu0 0
    %484 = vmatprep.subr.bf16.mxu0 0
    %485 = vmatpush1.bf16.msra.mxu0 0
    %486 = vmatprep.subr.bf16.mxu0 0
    %487 = vmatpush1.bf16.msra.mxu0 0
    %488 = vmatprep.subr.bf16.mxu0 0
    %489 = vmatpush1.bf16.msra.mxu0 0
    %490 = vmatprep.subr.bf16.mxu0 0
    %491 = vmatpush1.bf16.msra.mxu0 0
    %492 = vmatprep.mubr.bf16.mxu0 0
    %493 = vmatmul.mubr.bf16.gmra.mrb[0].mxu0 %v458
    %v494 = vpop.f32.mrb[0].mxu0
    %v495 = vadd.f32 0.0, %v494
    %v496 = vpop.f32.mrb[0].mxu0
    %v497 = vpop.f32.mrb[0].mxu0
    %v498 = vpop.f32.mrb[0].mxu0
    %499 = vdwg.mxu0
    %v500 = vrot.slane %v440, 7
    %v501 = vsel %vm442, %v500, %v439
    %v502 = vpack.c.b16 %v501, %v501
    %v507 = vunpack.c.l.b16 %v428
    %v508 = vunpack.c.l.b16 %v429
    %v509 = vunpack.c.l.b16 %v430
    %v510 = vunpack.c.l.b16 %v431
    %v511 = vpack.c.b16 %v508, %v507
    %v512 = vpack.c.b16 %v510, %v509
    %v516 = vsel %vm75, %v502, 0
    %518 = vmatprep.subr.bf16.mxu0 0
    %519 = vmatpush1.bf16.msra.mxu0 %v511
    %520 = vmatprep.subr.bf16.mxu0 0
    %521 = vmatpush1.bf16.msra.mxu0 %v512
    %522 = vmatprep.subr.bf16.mxu0 0
    %523 = vmatpush1.bf16.msra.mxu0 0
    %524 = vmatprep.subr.bf16.mxu0 0
    %525 = vmatpush1.bf16.msra.mxu0 0
    %526 = vmatprep.subr.bf16.mxu0 0
    %527 = vmatpush1.bf16.msra.mxu0 0
    %528 = vmatprep.subr.bf16.mxu0 0
    %529 = vmatpush1.bf16.msra.mxu0 0
    %530 = vmatprep.subr.bf16.mxu0 0
    %531 = vmatpush1.bf16.msra.mxu0 0
    %532 = vmatprep.subr.bf16.mxu0 0
    %533 = vmatpush1.bf16.msra.mxu0 0
    %534 = vmatprep.subr.bf16.mxu0 0
    %535 = vmatpush1.bf16.msra.mxu0 0
    %536 = vmatprep.subr.bf16.mxu0 0
    %537 = vmatpush1.bf16.msra.mxu0 0
    %538 = vmatprep.subr.bf16.mxu0 0
    %539 = vmatpush1.bf16.msra.mxu0 0
    %540 = vmatprep.subr.bf16.mxu0 0
    %541 = vmatpush1.bf16.msra.mxu0 0
    %542 = vmatprep.subr.bf16.mxu0 0
    %543 = vmatpush1.bf16.msra.mxu0 0
    %544 = vmatprep.subr.bf16.mxu0 0
    %545 = vmatpush1.bf16.msra.mxu0 0
    %546 = vmatprep.subr.bf16.mxu0 0
    %547 = vmatpush1.bf16.msra.mxu0 0
    %548 = vmatprep.subr.bf16.mxu0 0
    %549 = vmatpush1.bf16.msra.mxu0 0
    %550 = vmatprep.mubr.bf16.mxu0 0
    %551 = vmatmul.mubr.bf16.gmra.mrb[0].mxu0 %v516
    %v552 = vpop.f32.mrb[0].mxu0
    %v553 = vadd.f32 %v495, %v552
    %v554 = vpop.f32.mrb[0].mxu0
    %v555 = vpop.f32.mrb[0].mxu0
    %v556 = vpop.f32.mrb[0].mxu0
    %557 = vdwg.mxu0
    %v558 = vld [vmem:[%s7] sm:$0x1]
    %v560 = vlaneseq
    %v561 = vshrl.u32 %v560, 7
    %v562 = vsub.s32 0, %v561
    %v563 = vrot.slane %v558, %v562
    %v565 = vadd.f32 %v553, %v563
    %566 = vst [vmem:[#allocation5] sm:$0x3] %v565
    // Predicated region
    $region38: #{tpu_custom_call.1} parent=1 // pred_check
      _
    $region39: #{tpu_custom_call.1} parent=1 // pred_check_branch
      %568 = sbr.rel (0) target = $region41
    $region40: #{tpu_custom_call.1} parent=1 // pred_region
      %s570 = ssub.s32 32, 32
      %571 = vsyncadd [#allocation4], %s570
      %s573 = sshll.u32 [#allocation5], 4
      %s574 = int_to_ptr.vmem [resolvable:$true] %s573
      %576 = dma.vmem_to_hbm [thread:$0]  %s574, 32, %s8, [#allocation4]
    $region41: #{tpu_custom_call.1} parent=1 // pred_fallthru
      _
    // Predicated region
    $region42: #{tpu_custom_call.1} parent=1 // pred_check
      _
    $region43: #{tpu_custom_call.1} parent=1 // pred_check_branch
      %578 = sbr.rel (0) target = $region45
    $region44: #{tpu_custom_call.1} parent=1 // pred_region
      %579 = dma.done [#allocation4], 32
    $region45: #{tpu_custom_call.1} parent=1 // pred_fallthru
      _
    %580 = vsyncpa [#allocation3], 1
    %581 = vsyncpa [#allocation4], 1

// kernel: tpu_custom_call.1
$region0: #{tpu_custom_call.1}
  #allocation0 [shape = 'u32[]', space=smem, size = 0x4, offset = 0x4, fixed_abs, tag = 'smem constant byte address 0x4 - core index']
  #allocation1 [shape = 'u32[144,128]{1,0:T(1,128)}', space=vmem, size = 0x12000, scoped, tag = 'internal scratch']
  %s0 = inlined_call_operand.hbm [shape: bf16[2,8,32], index: 0, kind: input, shape index: {}]
  %s1 = inlined_call_operand.vmem [shape: f32[2,8], index: 1, kind: input, shape index: {}]
  %s2 = inlined_call_operand.vmem [shape: bf16[32,64], index: 2, kind: input, shape index: {}]
  %s3 = inlined_call_operand.vmem [shape: f32[1,64], index: 3, kind: input, shape index: {}]
  %s4 = inlined_call_operand.vmem [shape: bf16[64,2], index: 4, kind: input, shape index: {}]
  %s5 = inlined_call_operand.vmem [shape: f32[1,2], index: 5, kind: input, shape index: {}]
  %s6 = inlined_call_operand.vmem [shape: bf16[2,32,128], index: 6, kind: input, shape index: {}]
  %s7 = inlined_call_operand.vmem [shape: f32[1,128], index: 7, kind: input, shape index: {}]
  %s8 = inlined_call_operand.hbm [shape: f32[2,128], index: 8, kind: output, shape index: {}]
  %s9 = sld [smem:[#allocation0]]
  $region46: #{tpu_custom_call.1} parent=0
    _
  %s11 = ssub.s32 1, %s9
  %s12 = scalar_select 0, %s11, %s9
  $region1: #{tpu_custom_call.1} parent=0
    #allocation2 [shape = 'u8[4096]{0}', space=vmem, size = 0x1000, scoped, tag = 'input window, operand 0, single buffered']
    #allocation3 [shape = 's32[1]{0}', space=sflag, size = 0x4, scoped, tag = 'scoped memory for tpu_custom_call.1']
    #allocation4 [shape = 's32[1]{0}', space=sflag, size = 0x4, scoped, tag = 'scoped memory for tpu_custom_call.1']
    #allocation5 [shape = 'u8[1024]{0}', space=vmem, size = 0x400, scoped, tag = 'output window, operand 0, single buffered']
    %13 = vsyncpa [#allocation3], 0
    %14 = vsyncpa [#allocation4], 0
    // Predicated region
    $region2: #{tpu_custom_call.1} parent=1 // pred_check
      _
    $region3: #{tpu_custom_call.1} parent=1 // pred_check_branch
      %16 = sbr.rel (0) target = $region5
    $region4: #{tpu_custom_call.1} parent=1 // pred_region
      %s18 = ssub.s32 128, 128
      %19 = vsyncadd [#allocation3], %s18
      %s20 = sshll.u32 [#allocation2], 4
      %s21 = int_to_ptr.vmem [resolvable:$true] %s20
      %26 = dma.hbm_to_vmem [thread:$0]  %s0, 128, %s21, [#allocation3], 64, 64, 4
    $region5: #{tpu_custom_call.1} parent=1 // pred_fallthru
      _
    // Predicated region
    $region6: #{tpu_custom_call.1} parent=1 // pred_check
      _
    $region7: #{tpu_custom_call.1} parent=1 // pred_check_branch
      %28 = sbr.rel (0) target = $region9
    $region8: #{tpu_custom_call.1} parent=1 // pred_region
      _
    $region9: #{tpu_custom_call.1} parent=1 // pred_fallthru
      _
    // Predicated region
    $region10: #{tpu_custom_call.1} parent=1 // pred_check
      _
    $region11: #{tpu_custom_call.1} parent=1 // pred_check_branch
      %30 = sbr.rel (0) target = $region13
    $region12: #{tpu_custom_call.1} parent=1 // pred_region
      _
    $region13: #{tpu_custom_call.1} parent=1 // pred_fallthru
      _
    // Predicated region
    $region14: #{tpu_custom_call.1} parent=1 // pred_check
      _
    $region15: #{tpu_custom_call.1} parent=1 // pred_check_branch
      %32 = sbr.rel (0) target = $region17
    $region16: #{tpu_custom_call.1} parent=1 // pred_region
      _
    $region17: #{tpu_custom_call.1} parent=1 // pred_fallthru
      _
    // Predicated region
    $region18: #{tpu_custom_call.1} parent=1 // pred_check
      _
    $region19: #{tpu_custom_call.1} parent=1 // pred_check_branch
      %34 = sbr.rel (0) target = $region21
    $region20: #{tpu_custom_call.1} parent=1 // pred_region
      _
    $region21: #{tpu_custom_call.1} parent=1 // pred_fallthru
      _
    // Predicated region
    $region22: #{tpu_custom_call.1} parent=1 // pred_check
      _
    $region23: #{tpu_custom_call.1} parent=1 // pred_check_branch
      %36 = sbr.rel (0) target = $region25
    $region24: #{tpu_custom_call.1} parent=1 // pred_region
      _
    $region25: #{tpu_custom_call.1} parent=1 // pred_fallthru
      _
    // Predicated region
    $region26: #{tpu_custom_call.1} parent=1 // pred_check
      _
    $region27: #{tpu_custom_call.1} parent=1 // pred_check_branch
      %38 = sbr.rel (0) target = $region29
    $region28: #{tpu_custom_call.1} parent=1 // pred_region
      _
    $region29: #{tpu_custom_call.1} parent=1 // pred_fallthru
      _
    // Predicated region
    $region30: #{tpu_custom_call.1} parent=1 // pred_check
      _
    $region31: #{tpu_custom_call.1} parent=1 // pred_check_branch
      %40 = sbr.rel (0) target = $region33
    $region32: #{tpu_custom_call.1} parent=1 // pred_region
      _
    $region33: #{tpu_custom_call.1} parent=1 // pred_fallthru
      _
    // Predicated region
    $region34: #{tpu_custom_call.1} parent=1 // pred_check
      _
    $region35: #{tpu_custom_call.1} parent=1 // pred_check_branch
      %42 = sbr.rel (0) target = $region37
    $region36: #{tpu_custom_call.1} parent=1 // pred_region
      %43 = dma.done [#allocation3], 128
    $region37: #{tpu_custom_call.1} parent=1 // pred_fallthru
      _
    %v45 = vld [vmem:[#allocation2] sm:$0xf]
    %v46 = vld [vmem:[#allocation2 + $0x4] sm:$0xf]
    %v47 = vld [vmem:[%s2] sm:$0xf]
    %v48 = vld [vmem:[%s2 + $0x4] sm:$0xf]
    %v49 = vld [vmem:[%s2 + $0x8] sm:$0xf]
    %v50 = vld [vmem:[%s2 + $0xc] sm:$0xf]
    %v51 = vld [vmem:[%s3] sm:$0x1]
    %v53 = vlaneseq
    %v54 = vshrl.u32 %v53, 7
    %v55 = vsub.s32 0, %v54
    %v56 = vrot.slane %v51, %v55
    %v60 = vunpack.c.l.b16 %v45
    %v61 = vunpack.c.l.b16 %v46
    %v62 = vpack.c.b16 %v61, %v60
    %v67 = vunpack.c.l.b16 %v47
    %v68 = vunpack.c.l.b16 %v48
    %v69 = vunpack.c.l.b16 %v49
    %v70 = vunpack.c.l.b16 %v50
    %v71 = vpack.c.b16 %v68, %v67
    %v72 = vpack.c.b16 %v70, %v69
    %vm75 = vcmask 261120
    %v77 = vsel %vm75, %v62, 0
    %79 = vmatprep.subr.bf16.mxu0 0
    %80 = vmatpush1.bf16.msra.mxu0 %v71
    %81 = vmatprep.subr.bf16.mxu0 0
    %82 = vmatpush1.bf16.msra.mxu0 %v72
    %83 = vmatprep.subr.bf16.mxu0 0
    %84 = vmatpush1.bf16.msra.mxu0 0
    %85 = vmatprep.subr.bf16.mxu0 0
    %86 = vmatpush1.bf16.msra.mxu0 0
    %87 = vmatprep.subr.bf16.mxu0 0
    %88 = vmatpush1.bf16.msra.mxu0 0
    %89 = vmatprep.subr.bf16.mxu0 0
    %90 = vmatpush1.bf16.msra.mxu0 0
    %91 = vmatprep.subr.bf16.mxu0 0
    %92 = vmatpush1.bf16.msra.mxu0 0
    %93 = vmatprep.subr.bf16.mxu0 0
    %94 = vmatpush1.bf16.msra.mxu0 0
    %95 = vmatprep.subr.bf16.mxu0 0
    %96 = vmatpush1.bf16.msra.mxu0 0
    %97 = vmatprep.subr.bf16.mxu0 0
    %98 = vmatpush1.bf16.msra.mxu0 0
    %99 = vmatprep.subr.bf16.mxu0 0
    %100 = vmatpush1.bf16.msra.mxu0 0
    %101 = vmatprep.subr.bf16.mxu0 0
    %102 = vmatpush1.bf16.msra.mxu0 0
    %103 = vmatprep.subr.bf16.mxu0 0
    %104 = vmatpush1.bf16.msra.mxu0 0
    %105 = vmatprep.subr.bf16.mxu0 0
    %106 = vmatpush1.bf16.msra.mxu0 0
    %107 = vmatprep.subr.bf16.mxu0 0
    %108 = vmatpush1.bf16.msra.mxu0 0
    %109 = vmatprep.subr.bf16.mxu0 0
    %110 = vmatpush1.bf16.msra.mxu0 0
    %111 = vmatprep.mubr.bf16.mxu0 0
    %112 = vmatmul.mubr.bf16.gmra.mrb[0].mxu0 %v77
    %v113 = vpop.f32.mrb[0].mxu0
    %v114 = vadd.f32 %v56, %v113
    %v115 = vpop.f32.mrb[0].mxu0
    %v116 = vpop.f32.mrb[0].mxu0
    %v117 = vadd.f32 %v56, %v116
    %v118 = vpop.f32.mrb[0].mxu0
    %119 = vdwg.mxu0
    %v120 = vmax.f32 %v114, 0.0
    %v121 = vmax.f32 %v117, 0.0
    %v122 = vpack.c.bf16 %v121, %v120
    %v123 = vld [vmem:[%s4] sm:$0xf]
    %v124 = vld [vmem:[%s4 + $0x4] sm:$0xf]
    %v125 = vld [vmem:[%s4 + $0x8] sm:$0xf]
    %v126 = vld [vmem:[%s4 + $0xc] sm:$0xf]
    %v127 = vld [vmem:[%s4 + $0x10] sm:$0xf]
    %v128 = vld [vmem:[%s4 + $0x14] sm:$0xf]
    %v129 = vld [vmem:[%s4 + $0x18] sm:$0xf]
    %v130 = vld [vmem:[%s4 + $0x1c] sm:$0xf]
    %v131 = vld [vmem:[%s5] sm:$0x1]
    %v133 = vlaneseq
    %v134 = vshrl.u32 %v133, 7
    %v135 = vsub.s32 0, %v134
    %v136 = vrot.slane %v131, %v135
    %v146 = vunpack.c.l.b16 %v123
    %v147 = vunpack.c.l.b16 %v124
    %v148 = vunpack.c.l.b16 %v125
    %v149 = vunpack.c.l.b16 %v126
    %v150 = vunpack.c.l.b16 %v127
    %v151 = vunpack.c.l.b16 %v128
    %v152 = vunpack.c.l.b16 %v129
    %v153 = vunpack.c.l.b16 %v130
    %v154 = vpack.c.b16 %v147, %v146
    %v155 = vpack.c.b16 %v149, %v148
    %v156 = vpack.c.b16 %v151, %v150
    %v157 = vpack.c.b16 %v153, %v152
    %vm162 = vcmask 523264
    %v164 = vsel %vm162, %v122, 0
    %166 = vmatprep.subr.bf16.mxu0 0
    %167 = vmatpush1.bf16.msra.mxu0 %v154
    %168 = vmatprep.subr.bf16.mxu0 0
    %169 = vmatpush1.bf16.msra.mxu0 %v155
    %170 = vmatprep.subr.bf16.mxu0 0
    %171 = vmatpush1.bf16.msra.mxu0 %v156
    %172 = vmatprep.subr.bf16.mxu0 0
    %173 = vmatpush1.bf16.msra.mxu0 %v157
    %174 = vmatprep.subr.bf16.mxu0 0
    %175 = vmatpush1.bf16.msra.mxu0 0
    %176 = vmatprep.subr.bf16.mxu0 0
    %177 = vmatpush1.bf16.msra.mxu0 0
    %178 = vmatprep.subr.bf16.mxu0 0
    %179 = vmatpush1.bf16.msra.mxu0 0
    %180 = vmatprep.subr.bf16.mxu0 0
    %181 = vmatpush1.bf16.msra.mxu0 0
    %182 = vmatprep.subr.bf16.mxu0 0
    %183 = vmatpush1.bf16.msra.mxu0 0
    %184 = vmatprep.subr.bf16.mxu0 0
    %185 = vmatpush1.bf16.msra.mxu0 0
    %186 = vmatprep.subr.bf16.mxu0 0
    %187 = vmatpush1.bf16.msra.mxu0 0
    %188 = vmatprep.subr.bf16.mxu0 0
    %189 = vmatpush1.bf16.msra.mxu0 0
    %190 = vmatprep.subr.bf16.mxu0 0
    %191 = vmatpush1.bf16.msra.mxu0 0
    %192 = vmatprep.subr.bf16.mxu0 0
    %193 = vmatpush1.bf16.msra.mxu0 0
    %194 = vmatprep.subr.bf16.mxu0 0
    %195 = vmatpush1.bf16.msra.mxu0 0
    %196 = vmatprep.subr.bf16.mxu0 0
    %197 = vmatpush1.bf16.msra.mxu0 0
    %198 = vmatprep.mubr.bf16.mxu0 0
    %199 = vmatmul.mubr.bf16.gmra.mrb[0].mxu0 %v164
    %v200 = vpop.f32.mrb[0].mxu0
    %v201 = vadd.f32 %v136, %v200
    %v202 = vpop.f32.mrb[0].mxu0
    %v203 = vpop.f32.mrb[0].mxu0
    %v204 = vadd.f32 %v136, %v203
    %v205 = vpop.f32.mrb[0].mxu0
    %206 = vdwg.mxu0
    %207 = vxpose.xlu0.b32.start [1/16] %v201, 128
    %208 = vxpose.xlu0.b32.cont [2/16] 0.0, 128
    %209 = vxpose.xlu0.b32.cont [3/16] 0.0, 128
    %210 = vxpose.xlu0.b32.cont [4/16] 0.0, 128
    %211 = vxpose.xlu0.b32.cont [5/16] 0.0, 128
    %212 = vxpose.xlu0.b32.cont [6/16] 0.0, 128
    %213 = vxpose.xlu0.b32.cont [7/16] 0.0, 128
    %214 = vxpose.xlu0.b32.cont [8/16] 0.0, 128
    %215 = vxpose.xlu0.b32.cont [9/16] 0.0, 128
    %216 = vxpose.xlu0.b32.cont [10/16] 0.0, 128
    %217 = vxpose.xlu0.b32.cont [11/16] 0.0, 128
    %218 = vxpose.xlu0.b32.cont [12/16] 0.0, 128
    %219 = vxpose.xlu0.b32.cont [13/16] 0.0, 128
    %220 = vxpose.xlu0.b32.cont [14/16] 0.0, 128
    %221 = vxpose.xlu0.b32.cont [15/16] 0.0, 128
    %222 = vxpose.xlu0.b32.end [16/16] 0.0, 128
    %v223 = vpop.trf.xlu0
    %v224 = vpop.trf.xlu0
    %v225 = vpop.trf.xlu0
    %v226 = vpop.trf.xlu0
    %v227 = vpop.trf.xlu0
    %v228 = vpop.trf.xlu0
    %v229 = vpop.trf.xlu0
    %v230 = vpop.trf.xlu0
    %v231 = vpop.trf.xlu0
    %v232 = vpop.trf.xlu0
    %v233 = vpop.trf.xlu0
    %v234 = vpop.trf.xlu0
    %v235 = vpop.trf.xlu0
    %v236 = vpop.trf.xlu0
    %v237 = vpop.trf.xlu0
    %v238 = vpop.trf.xlu0
    %239 = vxpose.xlu0.b32.start [1/16] %v204, 128
    %240 = vxpose.xlu0.b32.cont [2/16] 0.0, 128
    %241 = vxpose.xlu0.b32.cont [3/16] 0.0, 128
    %242 = vxpose.xlu0.b32.cont [4/16] 0.0, 128
    %243 = vxpose.xlu0.b32.cont [5/16] 0.0, 128
    %244 = vxpose.xlu0.b32.cont [6/16] 0.0, 128
    %245 = vxpose.xlu0.b32.cont [7/16] 0.0, 128
    %246 = vxpose.xlu0.b32.cont [8/16] 0.0, 128
    %247 = vxpose.xlu0.b32.cont [9/16] 0.0, 128
    %248 = vxpose.xlu0.b32.cont [10/16] 0.0, 128
    %249 = vxpose.xlu0.b32.cont [11/16] 0.0, 128
    %250 = vxpose.xlu0.b32.cont [12/16] 0.0, 128
    %251 = vxpose.xlu0.b32.cont [13/16] 0.0, 128
    %252 = vxpose.xlu0.b32.cont [14/16] 0.0, 128
    %253 = vxpose.xlu0.b32.cont [15/16] 0.0, 128
    %254 = vxpose.xlu0.b32.end [16/16] 0.0, 128
    %v255 = vpop.trf.xlu0
    %v256 = vpop.trf.xlu0
    %v257 = vpop.trf.xlu0
    %v258 = vpop.trf.xlu0
    %v259 = vpop.trf.xlu0
    %v260 = vpop.trf.xlu0
    %v261 = vpop.trf.xlu0
    %v262 = vpop.trf.xlu0
    %v263 = vpop.trf.xlu0
    %v264 = vpop.trf.xlu0
    %v265 = vpop.trf.xlu0
    %v266 = vpop.trf.xlu0
    %v267 = vpop.trf.xlu0
    %v268 = vpop.trf.xlu0
    %v269 = vpop.trf.xlu0
    %v270 = vpop.trf.xlu0
    %v271 = vld [vmem:[%s1] sm:$0x3]
    %v274 = vunpack.c.l.s4 1966171168
    %v275 = vunpack.c.0.s8 %v274
    %v276 = vlaneseq
    %v277 = vshrl.u32 %v276, 7
    %v278 = vsub.s32 %v275, %v277
    %v279 = vrot.slane %v271, %v278
    %v280 = vcombine.high %v279, %v279
    %v282 = vunpack.c.l.s4 1966171168
    %v283 = vunpack.c.0.s8 %v282
    %v284 = vlaneseq
    %v285 = vshrl.u32 %v284, 7
    %v286 = vsub.s32 %v283, %v285
    %v287 = vrot.slane %v279, %v286
    %v289 = vunpack.c.l.s4 1966171168
    %v290 = vunpack.c.0.s8 %v289
    %v291 = vlaneseq
    %v292 = vshrl.u32 %v291, 7
    %v293 = vsub.s32 %v290, %v292
    %v294 = vrot.slane %v280, %v293
    %v295 = vlaneseq
    %v296 = vshrl.u32 %v295, 7
    %v297 = vsub.s32 0, %v296
    %v298 = vrot.slane %v287, %v297
    %v299 = vlaneseq
    %v300 = vshrl.u32 %v299, 7
    %v301 = vsub.s32 0, %v300
    %v302 = vrot.slane %v294, %v301
    %v305 = vadd.f32 %v223, %v298
    %v306 = vadd.f32 %v255, %v302
    %vm307 = vcmask 58368
    %v308 = vsel %vm307, %v305, -inf
    %309 = vmax.xlane.f32.xlu0 %v308
    %v310 = vpop.xlane.xlu0 %309
    %v311 = vsel %vm307, %v306, -inf
    %312 = vmax.xlane.f32.xlu0 %v311
    %v313 = vpop.xlane.xlu0 %312
    %v314 = vsub.f32 %v305, %v310
    %v315 = vsub.f32 %v306, %v313
    %v316 = vmul.f32 %v314, 1.442695
    %v317 = vpow.pop %v316
    %v318 = vmul.f32 %v315, 1.442695
    %v319 = vpow.pop %v318
    %v320 = vsel %vm307, %v317, 0.0
    %321 = vadd.xlane.f32.xlu0 %v320
    %v322 = vpop.xlane.xlu0 %321
    %v323 = vsel %vm307, %v319, 0.0
    %324 = vadd.xlane.f32.xlu0 %v323
    %v325 = vpop.xlane.xlu0 %324
    %v326 = vrcp.pop %v322
    %v327 = vrcp.pop %v325
    %v328 = vmul.f32 %v317, %v326
    %v329 = vmul.f32 %v319, %v327
    %v330 = vpack.c.bf16 %v328, %v328
    %v331 = vpack.c.bf16 %v329, %v329
    %vm332 = vcmask 64512
    %v334 = vsel %vm332, %v330, 0
    %vm336 = vcmask 1043456
    %v338 = vsel %vm336, %v45, 0
    %340 = vmatprep.subr.bf16.mxu0 0
    %341 = vmatpush1.bf16.msra.mxu0 %v338
    %342 = vmatprep.subr.bf16.mxu0 0
    %343 = vmatpush1.bf16.msra.mxu0 0
    %344 = vmatprep.subr.bf16.mxu0 0
    %345 = vmatpush1.bf16.msra.mxu0 0
    %346 = vmatprep.subr.bf16.mxu0 0
    %347 = vmatpush1.bf16.msra.mxu0 0
    %348 = vmatprep.subr.bf16.mxu0 0
    %349 = vmatpush1.bf16.msra.mxu0 0
    %350 = vmatprep.subr.bf16.mxu0 0
    %351 = vmatpush1.bf16.msra.mxu0 0
    %352 = vmatprep.subr.bf16.mxu0 0
    %353 = vmatpush1.bf16.msra.mxu0 0
    %354 = vmatprep.subr.bf16.mxu0 0
    %355 = vmatpush1.bf16.msra.mxu0 0
    %356 = vmatprep.subr.bf16.mxu0 0
    %357 = vmatpush1.bf16.msra.mxu0 0
    %358 = vmatprep.subr.bf16.mxu0 0
    %359 = vmatpush1.bf16.msra.mxu0 0
    %360 = vmatprep.subr.bf16.mxu0 0
    %361 = vmatpush1.bf16.msra.mxu0 0
    %362 = vmatprep.subr.bf16.mxu0 0
    %363 = vmatpush1.bf16.msra.mxu0 0
    %364 = vmatprep.subr.bf16.mxu0 0
    %365 = vmatpush1.bf16.msra.mxu0 0
    %366 = vmatprep.subr.bf16.mxu0 0
    %367 = vmatpush1.bf16.msra.mxu0 0
    %368 = vmatprep.subr.bf16.mxu0 0
    %369 = vmatpush1.bf16.msra.mxu0 0
    %370 = vmatprep.subr.bf16.mxu0 0
    %371 = vmatpush1.bf16.msra.mxu0 0
    %372 = vmatprep.mubr.bf16.mxu0 0
    %373 = vmatmul.mubr.bf16.gmra.mrb[0].mxu0 %v334
    %v374 = vpop.f32.mrb[0].mxu0
    %v375 = vadd.f32 0.0, %v374
    %v376 = vpop.f32.mrb[0].mxu0
    %v377 = vpop.f32.mrb[0].mxu0
    %v378 = vpop.f32.mrb[0].mxu0
    %379 = vdwg.mxu0
    %v381 = vsel %vm332, %v331, 0
    %v384 = vsel %vm336, %v46, 0
    %386 = vmatprep.subr.bf16.mxu0 0
    %387 = vmatpush1.bf16.msra.mxu0 %v384
    %388 = vmatprep.subr.bf16.mxu0 0
    %389 = vmatpush1.bf16.msra.mxu0 0
    %390 = vmatprep.subr.bf16.mxu0 0
    %391 = vmatpush1.bf16.msra.mxu0 0
    %392 = vmatprep.subr.bf16.mxu0 0
    %393 = vmatpush1.bf16.msra.mxu0 0
    %394 = vmatprep.subr.bf16.mxu0 0
    %395 = vmatpush1.bf16.msra.mxu0 0
    %396 = vmatprep.subr.bf16.mxu0 0
    %397 = vmatpush1.bf16.msra.mxu0 0
    %398 = vmatprep.subr.bf16.mxu0 0
    %399 = vmatpush1.bf16.msra.mxu0 0
    %400 = vmatprep.subr.bf16.mxu0 0
    %401 = vmatpush1.bf16.msra.mxu0 0
    %402 = vmatprep.subr.bf16.mxu0 0
    %403 = vmatpush1.bf16.msra.mxu0 0
    %404 = vmatprep.subr.bf16.mxu0 0
    %405 = vmatpush1.bf16.msra.mxu0 0
    %406 = vmatprep.subr.bf16.mxu0 0
    %407 = vmatpush1.bf16.msra.mxu0 0
    %408 = vmatprep.subr.bf16.mxu0 0
    %409 = vmatpush1.bf16.msra.mxu0 0
    %410 = vmatprep.subr.bf16.mxu0 0
    %411 = vmatpush1.bf16.msra.mxu0 0
    %412 = vmatprep.subr.bf16.mxu0 0
    %413 = vmatpush1.bf16.msra.mxu0 0
    %414 = vmatprep.subr.bf16.mxu0 0
    %415 = vmatpush1.bf16.msra.mxu0 0
    %416 = vmatprep.subr.bf16.mxu0 0
    %417 = vmatpush1.bf16.msra.mxu0 0
    %418 = vmatprep.mubr.bf16.mxu0 0
    %419 = vmatmul.mubr.bf16.gmra.mrb[0].mxu0 %v381
    %v420 = vpop.f32.mrb[0].mxu0
    %v421 = vadd.f32 0.0, %v420
    %v422 = vpop.f32.mrb[0].mxu0
    %v423 = vpop.f32.mrb[0].mxu0
    %v424 = vpop.f32.mrb[0].mxu0
    %425 = vdwg.mxu0
    %v426 = vpack.c.bf16 %v375, %v375
    %v427 = vpack.c.bf16 %v421, %v421
    %v428 = vld [vmem:[%s6] sm:$0xf]
    %v429 = vld [vmem:[%s6 + $0x4] sm:$0xf]
    %v430 = vld [vmem:[%s6 + $0x8] sm:$0xf]
    %v431 = vld [vmem:[%s6 + $0xc] sm:$0xf]
    %s432 = scalar_lea.vmem %s6, 16
    %v433 = vld [vmem:[%s432] sm:$0xf]
    %v434 = vld [vmem:[%s432 + $0x4] sm:$0xf]
    %v435 = vld [vmem:[%s432 + $0x8] sm:$0xf]
    %v436 = vld [vmem:[%s432 + $0xc] sm:$0xf]
    %v439 = vunpack.c.l.b16 %v426
    %v440 = vunpack.c.l.b16 %v427
    %v441 = vrot.slane %v439, 1
    %vm442 = vcmask 1041409
    %v443 = vsel %vm442, %v440, %v441
    %v444 = vpack.c.b16 %v443, %v443
    %v449 = vunpack.c.l.b16 %v433
    %v450 = vunpack.c.l.b16 %v434
    %v451 = vunpack.c.l.b16 %v435
    %v452 = vunpack.c.l.b16 %v436
    %v453 = vpack.c.b16 %v450, %v449
    %v454 = vpack.c.b16 %v452, %v451
    %v458 = vsel %vm75, %v444, 0
    %460 = vmatprep.subr.bf16.mxu0 0
    %461 = vmatpush1.bf16.msra.mxu0 %v453
    %462 = vmatprep.subr.bf16.mxu0 0
    %463 = vmatpush1.bf16.msra.mxu0 %v454
    %464 = vmatprep.subr.bf16.mxu0 0
    %465 = vmatpush1.bf16.msra.mxu0 0
    %466 = vmatprep.subr.bf16.mxu0 0
    %467 = vmatpush1.bf16.msra.mxu0 0
    %468 = vmatprep.subr.bf16.mxu0 0
    %469 = vmatpush1.bf16.msra.mxu0 0
    %470 = vmatprep.subr.bf16.mxu0 0
    %471 = vmatpush1.bf16.msra.mxu0 0
    %472 = vmatprep.subr.bf16.mxu0 0
    %473 = vmatpush1.bf16.msra.mxu0 0
    %474 = vmatprep.subr.bf16.mxu0 0
    %475 = vmatpush1.bf16.msra.mxu0 0
    %476 = vmatprep.subr.bf16.mxu0 0
    %477 = vmatpush1.bf16.msra.mxu0 0
    %478 = vmatprep.subr.bf16.mxu0 0
    %479 = vmatpush1.bf16.msra.mxu0 0
    %480 = vmatprep.subr.bf16.mxu0 0
    %481 = vmatpush1.bf16.msra.mxu0 0
    %482 = vmatprep.subr.bf16.mxu0 0
    %483 = vmatpush1.bf16.msra.mxu0 0
    %484 = vmatprep.subr.bf16.mxu0 0
    %485 = vmatpush1.bf16.msra.mxu0 0
    %486 = vmatprep.subr.bf16.mxu0 0
    %487 = vmatpush1.bf16.msra.mxu0 0
    %488 = vmatprep.subr.bf16.mxu0 0
    %489 = vmatpush1.bf16.msra.mxu0 0
    %490 = vmatprep.subr.bf16.mxu0 0
    %491 = vmatpush1.bf16.msra.mxu0 0
    %492 = vmatprep.mubr.bf16.mxu0 0
    %493 = vmatmul.mubr.bf16.gmra.mrb[0].mxu0 %v458
    %v494 = vpop.f32.mrb[0].mxu0
    %v495 = vadd.f32 0.0, %v494
    %v496 = vpop.f32.mrb[0].mxu0
    %v497 = vpop.f32.mrb[0].mxu0
    %v498 = vpop.f32.mrb[0].mxu0
    %499 = vdwg.mxu0
    %v500 = vrot.slane %v440, 7
    %v501 = vsel %vm442, %v500, %v439
    %v502 = vpack.c.b16 %v501, %v501
    %v507 = vunpack.c.l.b16 %v428
    %v508 = vunpack.c.l.b16 %v429
    %v509 = vunpack.c.l.b16 %v430
    %v510 = vunpack.c.l.b16 %v431
    %v511 = vpack.c.b16 %v508, %v507
    %v512 = vpack.c.b16 %v510, %v509
    %v516 = vsel %vm75, %v502, 0
    %518 = vmatprep.subr.bf16.mxu0 0
    %519 = vmatpush1.bf16.msra.mxu0 %v511
    %520 = vmatprep.subr.bf16.mxu0 0
    %521 = vmatpush1.bf16.msra.mxu0 %v512
    %522 = vmatprep.subr.bf16.mxu0 0
    %523 = vmatpush1.bf16.msra.mxu0 0
    %524 = vmatprep.subr.bf16.mxu0 0
    %525 = vmatpush1.bf16.msra.mxu0 0
    %526 = vmatprep.subr.bf16.mxu0 0
    %527 = vmatpush1.bf16.msra.mxu0 0
    %528 = vmatprep.subr.bf16.mxu0 0
    %529 = vmatpush1.bf16.msra.mxu0 0
    %530 = vmatprep.subr.bf16.mxu0 0
    %531 = vmatpush1.bf16.msra.mxu0 0
    %532 = vmatprep.subr.bf16.mxu0 0
    %533 = vmatpush1.bf16.msra.mxu0 0
    %534 = vmatprep.subr.bf16.mxu0 0
    %535 = vmatpush1.bf16.msra.mxu0 0
    %536 = vmatprep.subr.bf16.mxu0 0
    %537 = vmatpush1.bf16.msra.mxu0 0
    %538 = vmatprep.subr.bf16.mxu0 0
    %539 = vmatpush1.bf16.msra.mxu0 0
    %540 = vmatprep.subr.bf16.mxu0 0
    %541 = vmatpush1.bf16.msra.mxu0 0
    %542 = vmatprep.subr.bf16.mxu0 0
    %543 = vmatpush1.bf16.msra.mxu0 0
    %544 = vmatprep.subr.bf16.mxu0 0
    %545 = vmatpush1.bf16.msra.mxu0 0
    %546 = vmatprep.subr.bf16.mxu0 0
    %547 = vmatpush1.bf16.msra.mxu0 0
    %548 = vmatprep.subr.bf16.mxu0 0
    %549 = vmatpush1.bf16.msra.mxu0 0
    %550 = vmatprep.mubr.bf16.mxu0 0
    %551 = vmatmul.mubr.bf16.gmra.mrb[0].mxu0 %v516
    %v552 = vpop.f32.mrb[0].mxu0
    %v553 = vadd.f32 %v495, %v552
    %v554 = vpop.f32.mrb[0].mxu0
    %v555 = vpop.f32.mrb[0].mxu0
    %v556 = vpop.f32.mrb[0].mxu0
    %557 = vdwg.mxu0
    %v558 = vld [vmem:[%s7] sm:$0x1]
    %v560 = vlaneseq
    %v561 = vshrl.u32 %v560, 7
    %v562 = vsub.s32 0, %v561
    %v563 = vrot.slane %v558, %v562
    %v565 = vadd.f32 %v553, %v563
    %566 = vst [vmem:[#allocation5] sm:$0x3] %v565
    // Predicated region
    $region38: #{tpu_custom_call.1} parent=1 // pred_check
      _
    $region39: #{tpu_custom_call.1} parent=1 // pred_check_branch
      %568 = sbr.rel (0) target = $region41
    $region40: #{tpu_custom_call.1} parent=1 // pred_region
      %s570 = ssub.s32 32, 32
      %571 = vsyncadd [#allocation4], %s570
      %s573 = sshll.u32 [#allocation5], 4
      %s574 = int_to_ptr.vmem [resolvable:$true] %s573
      %576 = dma.vmem_to_hbm [thread:$0]  %s574, 32, %s8, [#allocation4]
    $region41: #{tpu_custom_call.1} parent=1 // pred_fallthru
      _
    // Predicated region
    $region42: #{tpu_custom_call.1} parent=1 // pred_check
      _
    $region43: #{tpu_custom_call.1} parent=1 // pred_check_branch
      %578 = sbr.rel (0) target = $region45
    $region44: #{tpu_custom_call.1} parent=1 // pred_region
      %579 = dma.done [#allocation4], 32
    $region45: #{tpu_custom_call.1} parent=1 // pred_fallthru
      _
    %580 = vsyncpa [#allocation3], 1
    %581 = vsyncpa [#allocation4], 1

</llo_original>
